<compile_context>
chip_gen: v7x
topology: tpu7x:2x2x1
jax: 0.10.0
libtpu: 0.0.40
codegen_flags: <defaults>
</compile_context>

<pallas_src>
import functools
import math

import jax
import jax.numpy as jnp
from jax import lax
from jax.experimental import pallas as pl
from jax.experimental.pallas import tpu as pltpu


def _relative_sinusoidal_pos_embed(seq_len, embedding_dim, padding_idx=0, init_size=1200):
    """Replicates RelativeSinusoidalPositionalEmbedding.forward (plain JAX glue)."""
    num_embeddings = init_size + 1
    half_dim = embedding_dim // 2
    emb_scale = math.log(10000) / (half_dim - 1)
    freqs = jnp.exp(jnp.arange(half_dim, dtype=jnp.float32) * -emb_scale)
    positions = jnp.arange(-num_embeddings // 2, num_embeddings // 2, dtype=jnp.float32)
    emb = positions[:, None] * freqs[None, :]
    weights = jnp.concatenate([jnp.sin(emb), jnp.cos(emb)], axis=1)     # (num_emb, dim)
    if embedding_dim % 2 == 1:
        weights = jnp.concatenate(
            [weights, jnp.zeros((num_embeddings, 1), jnp.float32)], axis=1)
    weights = weights.at[padding_idx].set(0.0)
    origin_shift = num_embeddings // 2 + 1
    idx = jnp.arange(-seq_len, seq_len) + origin_shift
    return weights[idx]                                                 # (2*seq_len, dim)


def _rel_attn_kernel(x_ref, wqv_ref, pos_ref, rr_ref, rw_ref, mask_ref, o_ref, *,
                     n_head, inv_scale):
    L, D = x_ref.shape[1], x_ref.shape[2]
    hd = D // n_head
    two_l = 2 * L
    f32, bf16 = jnp.float32, jnp.bfloat16
    dn = (((1,), (1,)), ((), ()))       # contract last dims: A @ B^T, no materialized .T

    x = x_ref[0]                                    # (L, D) f32
    x_bf = x.astype(bf16)
    wqv_bf = wqv_ref[...].astype(bf16)              # (D, 2D)
    pos_bf = pos_ref[...].astype(bf16)              # (2L, hd)
    rr = rr_ref[...]                                # (n_head, hd) f32
    rw = rw_ref[...]                                # (n_head, hd) f32
    mask_row = mask_ref[0]                          # (1, L) int32

    # Additive key mask, built once (large finite negative: masked keys underflow to
    # prob 0 in exp, no NaN rows).
    mask_bias = jnp.where(mask_row == 0, f32(-1e30), f32(0.0))          # (1, L)

    # q/v projection for ALL heads in one MXU-shape-optimal matmul (bf16 in, f32 acc).
    qv = jnp.dot(x_bf, wqv_bf, preferred_element_type=f32)              # (L, 2D)

    # Per-head score matmuls; results are stacked along sublanes so the shift and the
    # softmax run once over all heads.
    ac_blocks, bd_blocks = [], []
    for h in range(n_head):
        lo = h * hd
        q = qv[:, lo:lo + hd]                               # (L, hd) f32
        k_bf = x_bf[:, lo:lo + hd]                          # k is just a slice of x
        q_rr = (q + rr[h:h + 1, :]).astype(bf16)            # content-content LHS
        q_rw = (q + rw[h:h + 1, :]).astype(bf16)            # B_ + D_ == (q + r_w_bias) @ pos^T
        ac_blocks.append(lax.dot_general(q_rr, k_bf, dn,
                                         preferred_element_type=f32))   # (L, L)
        bd_blocks.append(lax.dot_general(q_rw, pos_bf, dn,
                                         preferred_element_type=f32))   # (L, 2L)

    ac_all = jnp.concatenate(ac_blocks, axis=0)             # (n_head*L, L)
    bd_all = jnp.concatenate(bd_blocks, axis=0)             # (n_head*L, 2L)

    # Relative shift for all heads at once: out[h*L+i, j] = bd_all[h*L+i, L + j - i].
    # Uniform half-roll, then a per-row circular right-roll by i decomposed over the
    # bits of i: log2(L) static lane-slice concats + row-masked selects (no gathers).
    y = jnp.concatenate([bd_all[:, L:], bd_all[:, :L]], axis=1)          # left-roll by L
    row = lax.broadcasted_iota(jnp.int32, (L, two_l), 0)                 # within-head row i
    row = jnp.concatenate([row] * n_head, axis=0)                        # (n_head*L, 2L)
    for b in range((L - 1).bit_length()):
        s = 1 << b
        rolled = jnp.concatenate([y[:, two_l - s:], y[:, :two_l - s]], axis=1)
        y = jnp.where((row & s) != 0, rolled, y)
    bd_shift = y[:, :L]                                                  # (n_head*L, L)

    # Masked softmax over all heads in one shot (f32, EUP reciprocal).
    score = (ac_all + bd_shift) * f32(inv_scale) + mask_bias
    m = jnp.max(score, axis=-1, keepdims=True)
    e = jnp.exp(score - m)
    p = e * pl.reciprocal(jnp.sum(e, axis=-1, keepdims=True), approx=True)

    # attn @ v per head; single lane-dense store of the (L, D) slab in (B, L, D) layout.
    outs = []
    for h in range(n_head):
        v_bf = qv[:, D + h * hd:D + (h + 1) * hd].astype(bf16)           # (L, hd)
        p_h = p[h * L:(h + 1) * L, :].astype(bf16)                       # (L, L)
        outs.append(jnp.dot(p_h, v_bf, preferred_element_type=f32))      # (L, hd)
    o_ref[0] = jnp.concatenate(outs, axis=-1).astype(o_ref.dtype)


def relative_multi_head_attn(x, mask, w_qv, r_r_bias, r_w_bias, n_head, scale=1.0):
    B, L, D = x.shape
    hd = D // n_head
    pos_embed = _relative_sinusoidal_pos_embed(L, hd)                    # (2L, hd)
    mask3 = mask.astype(jnp.int32).reshape(B, 1, L)

    kernel = functools.partial(_rel_attn_kernel, n_head=n_head, inv_scale=1.0 / scale)
    return pl.pallas_call(
        kernel,
        out_shape=jax.ShapeDtypeStruct((B, L, D), x.dtype),
        grid_spec=pltpu.PrefetchScalarGridSpec(
            num_scalar_prefetch=0,
            grid=(B,),
            in_specs=[
                pl.BlockSpec((1, L, D), lambda b: (b, 0, 0)),            # x (also serves as k)
                pl.BlockSpec((D, 2 * D), lambda b: (0, 0)),              # qv_linear weight
                pl.BlockSpec((2 * L, hd), lambda b: (0, 0)),             # relative pos embed
                pl.BlockSpec((n_head, hd), lambda b: (0, 0)),            # r_r_bias
                pl.BlockSpec((n_head, hd), lambda b: (0, 0)),            # r_w_bias
                pl.BlockSpec((1, 1, L), lambda b: (b, 0, 0)),            # mask
            ],
            out_specs=pl.BlockSpec((1, L, D), lambda b: (b, 0, 0)),      # (B, L, D), lane-dense
        ),
        compiler_params=pltpu.CompilerParams(
            dimension_semantics=("parallel",)),
    )(x, w_qv, pos_embed, r_r_bias, r_w_bias, mask3)


def reference_forward(x, mask, w_qv, r_r_bias, r_w_bias, n_head, scale=1.0):
    """Pure-JAX reference mirroring the PyTorch forward."""
    B, L, D = x.shape
    hd = D // n_head
    pos = _relative_sinusoidal_pos_embed(L, hd)
    qv = x @ w_qv
    q, v = qv[..., :D], qv[..., D:]
    q = q.reshape(B, L, n_head, hd).transpose(0, 2, 1, 3)
    k = x.reshape(B, L, n_head, hd).transpose(0, 2, 1, 3)
    v = v.reshape(B, L, n_head, hd).transpose(0, 2, 1, 3)
    rw_head_q = q + r_r_bias[None, :, None, :]
    AC = jnp.einsum('bnqd,bnkd->bnqk', rw_head_q, k)
    D_ = jnp.einsum('nd,ld->nl', r_w_bias, pos)[None, :, None, :]
    B_ = jnp.einsum('bnqd,ld->bnql', q, pos)
    BD = B_ + D_
    idx = jnp.arange(L)[None, :] - jnp.arange(L)[:, None] + L            # j - i + L
    BD = jnp.take_along_axis(BD, jnp.broadcast_to(idx, (B, n_head, L, L)), axis=-1)
    attn = (AC + BD) / scale
    attn = jnp.where(mask[:, None, None, :] == 0, -jnp.inf, attn)
    attn = jax.nn.softmax(attn, axis=-1)
    out = jnp.einsum('bnqk,bnkd->bnqd', attn, v)
    return out.transpose(0, 2, 1, 3).reshape(B, L, D)


if __name__ == "__main__":
    key = jax.random.PRNGKey(0)
    B, L, d_model, n_head = 2, 8, 32, 4
    hd = d_model // n_head
    k1, k2, k3, k4 = jax.random.split(key, 4)
    x = jax.random.normal(k1, (B, L, d_model), dtype=jnp.float32)
    # qv_linear weight (bias=False): stored here as (d_model, 2*d_model), applied as x @ W
    w_qv = jax.random.normal(k2, (d_model, 2 * d_model), dtype=jnp.float32) * 0.1
    # xavier-normal-like deterministic init for the relative biases
    r_r_bias = jax.random.normal(k3, (n_head, hd), dtype=jnp.float32) * 0.1
    r_w_bias = jax.random.normal(k4, (n_head, hd), dtype=jnp.float32) * 0.1
    mask = jnp.ones((B, L), dtype=jnp.int32).at[1, L - 1].set(0)

    out = relative_multi_head_attn(x, mask, w_qv, r_r_bias, r_w_bias, n_head, scale=1.0)
    out = jax.block_until_ready(out)

    ref = reference_forward(x, mask, w_qv, r_r_bias, r_w_bias, n_head, scale=1.0)
    err = float(jnp.max(jnp.abs(out - ref)))
    # Tolerance scaled for bf16 MXU operands + approx reciprocal; a wrong shift / mask /
    # layout produces O(1) errors and still trips this.
    assert err < 1e-1, f"max abs error too large: {err}"
    print("KERNEL_OK")
</pallas_src>

<mosaic_0001>
module attributes {stable_mosaic.version = 11 : i64} {
  func.func @_rel_attn_kernel(%arg0: i32, %arg1: memref<1x8x32xf32, #tpu.memory_space<vmem>>, %arg2: memref<32x64xf32, #tpu.memory_space<vmem>>, %arg3: memref<16x8xf32, #tpu.memory_space<vmem>>, %arg4: memref<4x8xf32, #tpu.memory_space<vmem>>, %arg5: memref<4x8xf32, #tpu.memory_space<vmem>>, %arg6: memref<1x1x8xi32, #tpu.memory_space<vmem>>, %arg7: memref<1x8x32xf32, #tpu.memory_space<vmem>>) attributes {dimension_semantics = [#tpu.dimension_semantics<parallel>], iteration_bounds = array<i64: 2>, scalar_prefetch = 0 : i64, scratch_operands = 0 : i64, tpu.core_type = #tpu.core_type<tc>, window_params = [{transform_indices = @transform_0, window_bounds = array<i64: 1, 8, 32>}, {pipeline_mode = #tpu.pipeline_mode<synchronous>, transform_indices = @transform_1, window_bounds = array<i64: 32, 64>}, {pipeline_mode = #tpu.pipeline_mode<synchronous>, transform_indices = @transform_2, window_bounds = array<i64: 16, 8>}, {pipeline_mode = #tpu.pipeline_mode<synchronous>, transform_indices = @transform_3, window_bounds = array<i64: 4, 8>}, {pipeline_mode = #tpu.pipeline_mode<synchronous>, transform_indices = @transform_4, window_bounds = array<i64: 4, 8>}, {transform_indices = @transform_5, window_bounds = array<i64: 1, 1, 8>}, {transform_indices = @transform_6, window_bounds = array<i64: 1, 8, 32>}]} {
    %c0 = arith.constant 0 : index
    %c0_0 = arith.constant 0 : index
    %c0_1 = arith.constant 0 : index
    %0 = vector.load %arg1[%c0, %c0_0, %c0_1] : memref<1x8x32xf32, #tpu.memory_space<vmem>>, vector<1x8x32xf32>
    %1 = vector.shape_cast %0 : vector<1x8x32xf32> to vector<8x32xf32>
    %2 = arith.truncf %1 : vector<8x32xf32> to vector<8x32xbf16>
    %c0_2 = arith.constant 0 : index
    %c0_3 = arith.constant 0 : index
    %3 = vector.load %arg2[%c0_2, %c0_3] : memref<32x64xf32, #tpu.memory_space<vmem>>, vector<32x64xf32>
    %4 = arith.truncf %3 : vector<32x64xf32> to vector<32x64xbf16>
    %c0_4 = arith.constant 0 : index
    %c0_5 = arith.constant 0 : index
    %5 = vector.load %arg3[%c0_4, %c0_5] : memref<16x8xf32, #tpu.memory_space<vmem>>, vector<16x8xf32>
    %6 = arith.truncf %5 : vector<16x8xf32> to vector<16x8xbf16>
    %c0_6 = arith.constant 0 : index
    %c0_7 = arith.constant 0 : index
    %7 = vector.load %arg4[%c0_6, %c0_7] : memref<4x8xf32, #tpu.memory_space<vmem>>, vector<4x8xf32>
    %c0_8 = arith.constant 0 : index
    %c0_9 = arith.constant 0 : index
    %8 = vector.load %arg5[%c0_8, %c0_9] : memref<4x8xf32, #tpu.memory_space<vmem>>, vector<4x8xf32>
    %c0_10 = arith.constant 0 : index
    %c0_11 = arith.constant 0 : index
    %c0_12 = arith.constant 0 : index
    %9 = vector.load %arg6[%c0_10, %c0_11, %c0_12] : memref<1x1x8xi32, #tpu.memory_space<vmem>>, vector<1x1x8xi32>
    %10 = vector.shape_cast %9 : vector<1x1x8xi32> to vector<1x8xi32>
    %c0_i32 = arith.constant 0 : i32
    %11 = vector.broadcast %c0_i32 : i32 to vector<1x8xi32>
    %12 = arith.cmpi eq, %10, %11 : vector<1x8xi32>
    %cst = arith.constant -1.000000e+30 : f32
    %cst_13 = arith.constant 0.000000e+00 : f32
    %13 = vector.broadcast %cst : f32 to vector<1x8xf32>
    %14 = vector.broadcast %cst_13 : f32 to vector<1x8xf32>
    %15 = arith.select %12, %13, %14 : vector<1x8xi1>, vector<1x8xf32>
    %cst_14 = arith.constant dense<0.000000e+00> : vector<8x64xf32>
    %16 = tpu.matmul %2, %4, %cst_14 {dimension_numbers = #tpu.dot_dimension_numbers<[1], [0], [0], [1], [0, 0, 1, 1], [], []>} : vector<8x32xbf16>, vector<32x64xbf16>, vector<8x64xf32> -> vector<8x64xf32>
    %17 = vector.extract_strided_slice %16 {offsets = [0, 0], sizes = [8, 8], strides = [1, 1]} : vector<8x64xf32> to vector<8x8xf32>
    %18 = vector.extract_strided_slice %2 {offsets = [0, 0], sizes = [8, 8], strides = [1, 1]} : vector<8x32xbf16> to vector<8x8xbf16>
    %19 = vector.extract_strided_slice %7 {offsets = [0, 0], sizes = [1, 8], strides = [1, 1]} : vector<4x8xf32> to vector<1x8xf32>
    %20 = vector.broadcast %19 : vector<1x8xf32> to vector<8x8xf32>
    %21 = arith.addf %17, %20 : vector<8x8xf32>
    %22 = arith.truncf %21 : vector<8x8xf32> to vector<8x8xbf16>
    %23 = vector.extract_strided_slice %8 {offsets = [0, 0], sizes = [1, 8], strides = [1, 1]} : vector<4x8xf32> to vector<1x8xf32>
    %24 = vector.broadcast %23 : vector<1x8xf32> to vector<8x8xf32>
    %25 = arith.addf %17, %24 : vector<8x8xf32>
    %26 = arith.truncf %25 : vector<8x8xf32> to vector<8x8xbf16>
    %cst_15 = arith.constant dense<0.000000e+00> : vector<8x8xf32>
    %27 = tpu.matmul %22, %18, %cst_15 {dimension_numbers = #tpu.dot_dimension_numbers<[1], [1], [0], [0], [0, 0, 1, 0], [], []>} : vector<8x8xbf16>, vector<8x8xbf16>, vector<8x8xf32> -> vector<8x8xf32>
    %cst_16 = arith.constant dense<0.000000e+00> : vector<8x16xf32>
    %28 = tpu.matmul %26, %6, %cst_16 {dimension_numbers = #tpu.dot_dimension_numbers<[1], [1], [0], [0], [0, 0, 1, 0], [], []>} : vector<8x8xbf16>, vector<16x8xbf16>, vector<8x16xf32> -> vector<8x16xf32>
    %29 = vector.extract_strided_slice %16 {offsets = [0, 8], sizes = [8, 8], strides = [1, 1]} : vector<8x64xf32> to vector<8x8xf32>
    %30 = vector.extract_strided_slice %2 {offsets = [0, 8], sizes = [8, 8], strides = [1, 1]} : vector<8x32xbf16> to vector<8x8xbf16>
    %31 = vector.extract_strided_slice %7 {offsets = [1, 0], sizes = [1, 8], strides = [1, 1]} : vector<4x8xf32> to vector<1x8xf32>
    %32 = vector.broadcast %31 : vector<1x8xf32> to vector<8x8xf32>
    %33 = arith.addf %29, %32 : vector<8x8xf32>
    %34 = arith.truncf %33 : vector<8x8xf32> to vector<8x8xbf16>
    %35 = vector.extract_strided_slice %8 {offsets = [1, 0], sizes = [1, 8], strides = [1, 1]} : vector<4x8xf32> to vector<1x8xf32>
    %36 = vector.broadcast %35 : vector<1x8xf32> to vector<8x8xf32>
    %37 = arith.addf %29, %36 : vector<8x8xf32>
    %38 = arith.truncf %37 : vector<8x8xf32> to vector<8x8xbf16>
    %cst_17 = arith.constant dense<0.000000e+00> : vector<8x8xf32>
    %39 = tpu.matmul %34, %30, %cst_17 {dimension_numbers = #tpu.dot_dimension_numbers<[1], [1], [0], [0], [0, 0, 1, 0], [], []>} : vector<8x8xbf16>, vector<8x8xbf16>, vector<8x8xf32> -> vector<8x8xf32>
    %cst_18 = arith.constant dense<0.000000e+00> : vector<8x16xf32>
    %40 = tpu.matmul %38, %6, %cst_18 {dimension_numbers = #tpu.dot_dimension_numbers<[1], [1], [0], [0], [0, 0, 1, 0], [], []>} : vector<8x8xbf16>, vector<16x8xbf16>, vector<8x16xf32> -> vector<8x16xf32>
    %41 = vector.extract_strided_slice %16 {offsets = [0, 16], sizes = [8, 8], strides = [1, 1]} : vector<8x64xf32> to vector<8x8xf32>
    %42 = vector.extract_strided_slice %2 {offsets = [0, 16], sizes = [8, 8], strides = [1, 1]} : vector<8x32xbf16> to vector<8x8xbf16>
    %43 = vector.extract_strided_slice %7 {offsets = [2, 0], sizes = [1, 8], strides = [1, 1]} : vector<4x8xf32> to vector<1x8xf32>
    %44 = vector.broadcast %43 : vector<1x8xf32> to vector<8x8xf32>
    %45 = arith.addf %41, %44 : vector<8x8xf32>
    %46 = arith.truncf %45 : vector<8x8xf32> to vector<8x8xbf16>
    %47 = vector.extract_strided_slice %8 {offsets = [2, 0], sizes = [1, 8], strides = [1, 1]} : vector<4x8xf32> to vector<1x8xf32>
    %48 = vector.broadcast %47 : vector<1x8xf32> to vector<8x8xf32>
    %49 = arith.addf %41, %48 : vector<8x8xf32>
    %50 = arith.truncf %49 : vector<8x8xf32> to vector<8x8xbf16>
    %cst_19 = arith.constant dense<0.000000e+00> : vector<8x8xf32>
    %51 = tpu.matmul %46, %42, %cst_19 {dimension_numbers = #tpu.dot_dimension_numbers<[1], [1], [0], [0], [0, 0, 1, 0], [], []>} : vector<8x8xbf16>, vector<8x8xbf16>, vector<8x8xf32> -> vector<8x8xf32>
    %cst_20 = arith.constant dense<0.000000e+00> : vector<8x16xf32>
    %52 = tpu.matmul %50, %6, %cst_20 {dimension_numbers = #tpu.dot_dimension_numbers<[1], [1], [0], [0], [0, 0, 1, 0], [], []>} : vector<8x8xbf16>, vector<16x8xbf16>, vector<8x16xf32> -> vector<8x16xf32>
    %53 = vector.extract_strided_slice %16 {offsets = [0, 24], sizes = [8, 8], strides = [1, 1]} : vector<8x64xf32> to vector<8x8xf32>
    %54 = vector.extract_strided_slice %2 {offsets = [0, 24], sizes = [8, 8], strides = [1, 1]} : vector<8x32xbf16> to vector<8x8xbf16>
    %55 = vector.extract_strided_slice %7 {offsets = [3, 0], sizes = [1, 8], strides = [1, 1]} : vector<4x8xf32> to vector<1x8xf32>
    %56 = vector.broadcast %55 : vector<1x8xf32> to vector<8x8xf32>
    %57 = arith.addf %53, %56 : vector<8x8xf32>
    %58 = arith.truncf %57 : vector<8x8xf32> to vector<8x8xbf16>
    %59 = vector.extract_strided_slice %8 {offsets = [3, 0], sizes = [1, 8], strides = [1, 1]} : vector<4x8xf32> to vector<1x8xf32>
    %60 = vector.broadcast %59 : vector<1x8xf32> to vector<8x8xf32>
    %61 = arith.addf %53, %60 : vector<8x8xf32>
    %62 = arith.truncf %61 : vector<8x8xf32> to vector<8x8xbf16>
    %cst_21 = arith.constant dense<0.000000e+00> : vector<8x8xf32>
    %63 = tpu.matmul %58, %54, %cst_21 {dimension_numbers = #tpu.dot_dimension_numbers<[1], [1], [0], [0], [0, 0, 1, 0], [], []>} : vector<8x8xbf16>, vector<8x8xbf16>, vector<8x8xf32> -> vector<8x8xf32>
    %cst_22 = arith.constant dense<0.000000e+00> : vector<8x16xf32>
    %64 = tpu.matmul %62, %6, %cst_22 {dimension_numbers = #tpu.dot_dimension_numbers<[1], [1], [0], [0], [0, 0, 1, 0], [], []>} : vector<8x8xbf16>, vector<16x8xbf16>, vector<8x16xf32> -> vector<8x16xf32>
    %65 = tpu.concatenate %27, %39, %51, %63 in 0 : vector<8x8xf32>, vector<8x8xf32>, vector<8x8xf32>, vector<8x8xf32> -> vector<32x8xf32>
    %66 = tpu.concatenate %28, %40, %52, %64 in 0 : vector<8x16xf32>, vector<8x16xf32>, vector<8x16xf32>, vector<8x16xf32> -> vector<32x16xf32>
    %67 = vector.extract_strided_slice %66 {offsets = [0, 8], sizes = [32, 8], strides = [1, 1]} : vector<32x16xf32> to vector<32x8xf32>
    %68 = vector.extract_strided_slice %66 {offsets = [0, 0], sizes = [32, 8], strides = [1, 1]} : vector<32x16xf32> to vector<32x8xf32>
    %69 = tpu.concatenate %67, %68 in 1 : vector<32x8xf32>, vector<32x8xf32> -> vector<32x16xf32>
    %70 = tpu.iota {dimensions = array<i32: 0>} : vector<8x16xi32>
    %71 = tpu.concatenate %70, %70, %70, %70 in 0 : vector<8x16xi32>, vector<8x16xi32>, vector<8x16xi32>, vector<8x16xi32> -> vector<32x16xi32>
    %72 = vector.extract_strided_slice %69 {offsets = [0, 15], sizes = [32, 1], strides = [1, 1]} : vector<32x16xf32> to vector<32x1xf32>
    %73 = vector.extract_strided_slice %69 {offsets = [0, 0], sizes = [32, 15], strides = [1, 1]} : vector<32x16xf32> to vector<32x15xf32>
    %74 = tpu.concatenate %72, %73 in 1 : vector<32x1xf32>, vector<32x15xf32> -> vector<32x16xf32>
    %c1_i32 = arith.constant 1 : i32
    %75 = vector.broadcast %c1_i32 : i32 to vector<32x16xi32>
    %76 = arith.andi %71, %75 : vector<32x16xi32>
    %c0_i32_23 = arith.constant 0 : i32
    %77 = vector.broadcast %c0_i32_23 : i32 to vector<32x16xi32>
    %78 = arith.cmpi ne, %76, %77 : vector<32x16xi32>
    %79 = arith.select %78, %74, %69 : vector<32x16xi1>, vector<32x16xf32>
    %80 = vector.extract_strided_slice %79 {offsets = [0, 14], sizes = [32, 2], strides = [1, 1]} : vector<32x16xf32> to vector<32x2xf32>
    %81 = vector.extract_strided_slice %79 {offsets = [0, 0], sizes = [32, 14], strides = [1, 1]} : vector<32x16xf32> to vector<32x14xf32>
    %82 = tpu.concatenate %80, %81 in 1 : vector<32x2xf32>, vector<32x14xf32> -> vector<32x16xf32>
    %c2_i32 = arith.constant 2 : i32
    %83 = vector.broadcast %c2_i32 : i32 to vector<32x16xi32>
    %84 = arith.andi %71, %83 : vector<32x16xi32>
    %c0_i32_24 = arith.constant 0 : i32
    %85 = vector.broadcast %c0_i32_24 : i32 to vector<32x16xi32>
    %86 = arith.cmpi ne, %84, %85 : vector<32x16xi32>
    %87 = arith.select %86, %82, %79 : vector<32x16xi1>, vector<32x16xf32>
    %88 = vector.extract_strided_slice %87 {offsets = [0, 12], sizes = [32, 4], strides = [1, 1]} : vector<32x16xf32> to vector<32x4xf32>
    %89 = vector.extract_strided_slice %87 {offsets = [0, 0], sizes = [32, 12], strides = [1, 1]} : vector<32x16xf32> to vector<32x12xf32>
    %90 = tpu.concatenate %88, %89 in 1 : vector<32x4xf32>, vector<32x12xf32> -> vector<32x16xf32>
    %c4_i32 = arith.constant 4 : i32
    %91 = vector.broadcast %c4_i32 : i32 to vector<32x16xi32>
    %92 = arith.andi %71, %91 : vector<32x16xi32>
    %c0_i32_25 = arith.constant 0 : i32
    %93 = vector.broadcast %c0_i32_25 : i32 to vector<32x16xi32>
    %94 = arith.cmpi ne, %92, %93 : vector<32x16xi32>
    %95 = arith.select %94, %90, %87 : vector<32x16xi1>, vector<32x16xf32>
    %96 = vector.extract_strided_slice %95 {offsets = [0, 0], sizes = [32, 8], strides = [1, 1]} : vector<32x16xf32> to vector<32x8xf32>
    %97 = arith.addf %65, %96 : vector<32x8xf32>
    %cst_26 = arith.constant 1.000000e+00 : f32
    %98 = vector.broadcast %cst_26 : f32 to vector<32x8xf32>
    %99 = arith.mulf %97, %98 : vector<32x8xf32>
    %100 = vector.broadcast %15 : vector<1x8xf32> to vector<32x8xf32>
    %101 = arith.addf %99, %100 : vector<32x8xf32>
    %cst_27 = arith.constant dense<0xFF800000> : vector<32xf32>
    %102 = vector.multi_reduction <maximumf>, %101, %cst_27 [1] : vector<32x8xf32> to vector<32xf32>
    %103 = vector.shape_cast %102 : vector<32xf32> to vector<32x1xf32>
    %104 = vector.broadcast %103 : vector<32x1xf32> to vector<32x8xf32>
    %105 = arith.subf %101, %104 : vector<32x8xf32>
    %106 = math.exp %105 : vector<32x8xf32>
    %cst_28 = arith.constant dense<0.000000e+00> : vector<32xf32>
    %107 = vector.multi_reduction <add>, %106, %cst_28 [1] : vector<32x8xf32> to vector<32xf32>
    %108 = vector.shape_cast %107 : vector<32xf32> to vector<32x1xf32>
    %109 = tpu.reciprocal %108 {approx = true} : vector<32x1xf32> -> vector<32x1xf32>
    %110 = vector.broadcast %109 : vector<32x1xf32> to vector<32x8xf32>
    %111 = arith.mulf %106, %110 : vector<32x8xf32>
    %112 = vector.extract_strided_slice %16 {offsets = [0, 32], sizes = [8, 8], strides = [1, 1]} : vector<8x64xf32> to vector<8x8xf32>
    %113 = arith.truncf %112 : vector<8x8xf32> to vector<8x8xbf16>
    %114 = vector.extract_strided_slice %111 {offsets = [0, 0], sizes = [8, 8], strides = [1, 1]} : vector<32x8xf32> to vector<8x8xf32>
    %115 = arith.truncf %114 : vector<8x8xf32> to vector<8x8xbf16>
    %cst_29 = arith.constant dense<0.000000e+00> : vector<8x8xf32>
    %116 = tpu.matmul %115, %113, %cst_29 {dimension_numbers = #tpu.dot_dimension_numbers<[1], [0], [0], [1], [0, 0, 1, 1], [], []>} : vector<8x8xbf16>, vector<8x8xbf16>, vector<8x8xf32> -> vector<8x8xf32>
    %117 = vector.extract_strided_slice %16 {offsets = [0, 40], sizes = [8, 8], strides = [1, 1]} : vector<8x64xf32> to vector<8x8xf32>
    %118 = arith.truncf %117 : vector<8x8xf32> to vector<8x8xbf16>
    %119 = vector.extract_strided_slice %111 {offsets = [8, 0], sizes = [8, 8], strides = [1, 1]} : vector<32x8xf32> to vector<8x8xf32>
    %120 = arith.truncf %119 : vector<8x8xf32> to vector<8x8xbf16>
    %cst_30 = arith.constant dense<0.000000e+00> : vector<8x8xf32>
    %121 = tpu.matmul %120, %118, %cst_30 {dimension_numbers = #tpu.dot_dimension_numbers<[1], [0], [0], [1], [0, 0, 1, 1], [], []>} : vector<8x8xbf16>, vector<8x8xbf16>, vector<8x8xf32> -> vector<8x8xf32>
    %122 = vector.extract_strided_slice %16 {offsets = [0, 48], sizes = [8, 8], strides = [1, 1]} : vector<8x64xf32> to vector<8x8xf32>
    %123 = arith.truncf %122 : vector<8x8xf32> to vector<8x8xbf16>
    %124 = vector.extract_strided_slice %111 {offsets = [16, 0], sizes = [8, 8], strides = [1, 1]} : vector<32x8xf32> to vector<8x8xf32>
    %125 = arith.truncf %124 : vector<8x8xf32> to vector<8x8xbf16>
    %cst_31 = arith.constant dense<0.000000e+00> : vector<8x8xf32>
    %126 = tpu.matmul %125, %123, %cst_31 {dimension_numbers = #tpu.dot_dimension_numbers<[1], [0], [0], [1], [0, 0, 1, 1], [], []>} : vector<8x8xbf16>, vector<8x8xbf16>, vector<8x8xf32> -> vector<8x8xf32>
    %127 = vector.extract_strided_slice %16 {offsets = [0, 56], sizes = [8, 8], strides = [1, 1]} : vector<8x64xf32> to vector<8x8xf32>
    %128 = arith.truncf %127 : vector<8x8xf32> to vector<8x8xbf16>
    %129 = vector.extract_strided_slice %111 {offsets = [24, 0], sizes = [8, 8], strides = [1, 1]} : vector<32x8xf32> to vector<8x8xf32>
    %130 = arith.truncf %129 : vector<8x8xf32> to vector<8x8xbf16>
    %cst_32 = arith.constant dense<0.000000e+00> : vector<8x8xf32>
    %131 = tpu.matmul %130, %128, %cst_32 {dimension_numbers = #tpu.dot_dimension_numbers<[1], [0], [0], [1], [0, 0, 1, 1], [], []>} : vector<8x8xbf16>, vector<8x8xbf16>, vector<8x8xf32> -> vector<8x8xf32>
    %132 = tpu.concatenate %116, %121, %126, %131 in 1 : vector<8x8xf32>, vector<8x8xf32>, vector<8x8xf32>, vector<8x8xf32> -> vector<8x32xf32>
    %c0_33 = arith.constant 0 : index
    %c0_34 = arith.constant 0 : index
    %c0_35 = arith.constant 0 : index
    %133 = vector.load %arg7[%c0_33, %c0_34, %c0_35] : memref<1x8x32xf32, #tpu.memory_space<vmem>>, vector<1x8x32xf32>
    %134 = vector.shape_cast %133 : vector<1x8x32xf32> to vector<8x32xf32>
    %135 = vector.shape_cast %132 : vector<8x32xf32> to vector<1x8x32xf32>
    tpu.vector_store %arg7[%c0_33, %c0_34, %c0_35], %135 {strides = array<i32>} : memref<1x8x32xf32, #tpu.memory_space<vmem>>, vector<1x8x32xf32>,
    return
  }
  func.func @transform_0(%arg0: i32) -> (i32, i32, i32) {
    %c0_i32 = arith.constant 0 : i32
    %c0_i32_0 = arith.constant 0 : i32
    %c0_i32_1 = arith.constant 0 : i32
    return %arg0, %c0_i32, %c0_i32_0 : i32, i32, i32
  }
  func.func @transform_1(%arg0: i32) -> (i32, i32) {
    %c0_i32 = arith.constant 0 : i32
    %c0_i32_0 = arith.constant 0 : i32
    %c0_i32_1 = arith.constant 0 : i32
    return %c0_i32, %c0_i32_0 : i32, i32
  }
  func.func @transform_2(%arg0: i32) -> (i32, i32) {
    %c0_i32 = arith.constant 0 : i32
    %c0_i32_0 = arith.constant 0 : i32
    %c0_i32_1 = arith.constant 0 : i32
    return %c0_i32, %c0_i32_0 : i32, i32
  }
  func.func @transform_3(%arg0: i32) -> (i32, i32) {
    %c0_i32 = arith.constant 0 : i32
    %c0_i32_0 = arith.constant 0 : i32
    %c0_i32_1 = arith.constant 0 : i32
    return %c0_i32, %c0_i32_0 : i32, i32
  }
  func.func @transform_4(%arg0: i32) -> (i32, i32) {
    %c0_i32 = arith.constant 0 : i32
    %c0_i32_0 = arith.constant 0 : i32
    %c0_i32_1 = arith.constant 0 : i32
    return %c0_i32, %c0_i32_0 : i32, i32
  }
  func.func @transform_5(%arg0: i32) -> (i32, i32, i32) {
    %c0_i32 = arith.constant 0 : i32
    %c0_i32_0 = arith.constant 0 : i32
    %c0_i32_1 = arith.constant 0 : i32
    return %arg0, %c0_i32, %c0_i32_0 : i32, i32, i32
  }
  func.func @transform_6(%arg0: i32) -> (i32, i32, i32) {
    %c0_i32 = arith.constant 0 : i32
    %c0_i32_0 = arith.constant 0 : i32
    %c0_i32_1 = arith.constant 0 : i32
    return %arg0, %c0_i32, %c0_i32_0 : i32, i32, i32
  }
}

</mosaic_0001>

<llo_original>
// kernel: tpu_custom_call.1
$region0: #{tpu_custom_call.1}
  #allocation0 [shape = 'u32[]', space=smem, size = 0x4, offset = 0x4, fixed_abs, tag = 'smem constant byte address 0x4 - core index']
  #allocation1 [shape = 'u32[144,128]{1,0:T(1,128)}', space=vmem, size = 0x12000, scoped, tag = 'internal scratch']
  %s0 = inlined_call_operand.vmem [shape: f32[2,8,32], index: 0, kind: input, shape index: {}]
  %s1 = inlined_call_operand.hbm [shape: f32[32,64], index: 1, kind: input, shape index: {}]
  %s2 = inlined_call_operand.vmem [shape: f32[16,8], index: 2, kind: input, shape index: {}]
  %s3 = inlined_call_operand.vmem [shape: f32[4,8], index: 3, kind: input, shape index: {}]
  %s4 = inlined_call_operand.vmem [shape: f32[4,8], index: 4, kind: input, shape index: {}]
  %s5 = inlined_call_operand.vmem [shape: s32[2,1,8], index: 5, kind: input, shape index: {}]
  %s6 = inlined_call_operand.hbm [shape: f32[2,8,32], index: 6, kind: output, shape index: {}]
  %s7 = sld [smem:[#allocation0]]
  $region61: #{tpu_custom_call.1} parent=0
    _
  %s9 = ssub.s32 1, %s7
  %s10 = scalar_select 0, %s9, %s7
  $region1: #{tpu_custom_call.1} parent=0
    #allocation2 [shape = 'u8[16384]{0}', space=vmem, size = 0x4000, scoped, tag = 'input window, operand 1, single buffered']
    #allocation3 [shape = 's32[2]{0}', space=sflag, size = 0x8, scoped, tag = 'scoped memory for tpu_custom_call.1']
    #allocation4 [shape = 's32[2]{0}', space=sflag, size = 0x8, scoped, tag = 'scoped memory for tpu_custom_call.1']
    #allocation5 [shape = 'u8[8192]{0}', space=vmem, size = 0x2000, scoped, tag = 'output window, operand 0']
    %11 = vsyncpa [#allocation3], 0
    %12 = vsyncpa [#allocation4], 0
    %s13 = scalar_lea.sflag [#allocation4], 1
    %14 = vsyncpa %s13, 0
    loop: start=0, step=1, limit=4
    $region2: #{tpu_custom_call.1} parent=1 // loop_pre_header
      _
    $region3: #{tpu_custom_call.1} parent=1 // loop_header
      %s16 = sphi 0, %s20
      %p17 = scmp.ge.s32.totalorder %s16, 4
      %s26 = sphi 0, %s28
      %s29 = sphi 0, %s26
      %s30 = sphi 0, %s29
      %s46 = sphi 0, %s30
      %s50 = sphi 0, %s50
      %s52 = sphi 0, %s50
      %s53 = sphi 0, %s52
      %s67 = sphi 0, %s53
      %s71 = sphi 0, %s71
      %s73 = sphi 0, %s71
      %s74 = sphi 0, %s73
      %s88 = sphi 0, %s74
      %s92 = sphi 0, %s92
      %s94 = sphi 0, %s92
      %s95 = sphi 0, %s94
      %s109 = sphi 0, %s95
      %s113 = sphi 0, %s113
      %s115 = sphi 0, %s113
      %s116 = sphi 0, %s115
      %s130 = sphi 0, %s116
      %s136 = sphi 0, %s138
      %s139 = sphi 0, %s136
      %s140 = sphi 0, %s139
      %s156 = sphi 0, %s140
      %s162 = sphi 0, %s164
      %s165 = sphi 0, %s162
      %s166 = sphi 0, %s165
      %s182 = sphi 0, %s166
    $region4: #{tpu_custom_call.1} parent=1 // loop_header_branch
      %19 = sbr.rel (%p17) target = $region8
    $region5: #{tpu_custom_call.1} parent=1 // loop_body
      %s21 = ssub.s32 %s16, 1
      %s22 = ssub.s32 %s16, 2
      %s23 = sadd.s32 %s16, 1
      %s24 = ssub.s32 %s16, %s23
      %p25 = scmp.eq.s32.totalorder %s24, 0
      %s27 = sadd.s32 %s26, 1
      %s28 = scalar_select %p25, %s26, %s27
      %p31 = pneg %p25
      %p32 = scmp.eq.s32.totalorder %s16, 1
      %p33 = por %p31, %p32
      %p34 = scmp.ne.s32.totalorder %s26, %s29
      %p35 = scmp.eq.s32.totalorder %s16, 0
      %p36 = por %p34, %p35
      %p37 = scmp.ne.s32.totalorder %s26, %s29
      %p38 = scmp.eq.s32.totalorder %s21, 1
      %p39 = por %p37, %p38
      %p40 = scmp.ne.s32.totalorder %s29, %s30
      %p41 = scmp.eq.s32.totalorder %s21, 0
      %p42 = por %p40, %p41
      %p43 = scmp.ne.s32.totalorder %s29, %s30
      %p44 = scmp.eq.s32.totalorder %s22, 1
      %p45 = por %p43, %p44
      %p47 = scmp.ne.s32.totalorder %s30, %s46
      %p48 = scmp.eq.s32.totalorder %s22, 0
      %p49 = por %p47, %p48
      %s51 = sadd.s32 %s50, 1
      %p54 = scmp.eq.s32.totalorder %s16, 1
      %p55 = scmp.ne.s32.totalorder %s50, %s52
      %p56 = scmp.eq.s32.totalorder %s16, 0
      %p57 = por %p55, %p56
      %p58 = scmp.ne.s32.totalorder %s50, %s52
      %p59 = scmp.eq.s32.totalorder %s21, 1
      %p60 = por %p58, %p59
      %p61 = scmp.ne.s32.totalorder %s52, %s53
      %p62 = scmp.eq.s32.totalorder %s21, 0
      %p63 = por %p61, %p62
      %p64 = scmp.ne.s32.totalorder %s52, %s53
      %p65 = scmp.eq.s32.totalorder %s22, 1
      %p66 = por %p64, %p65
      %p68 = scmp.ne.s32.totalorder %s53, %s67
      %p69 = scmp.eq.s32.totalorder %s22, 0
      %p70 = por %p68, %p69
      %s72 = sadd.s32 %s71, 1
      %p75 = scmp.eq.s32.totalorder %s16, 1
      %p76 = scmp.ne.s32.totalorder %s71, %s73
      %p77 = scmp.eq.s32.totalorder %s16, 0
      %p78 = por %p76, %p77
      %p79 = scmp.ne.s32.totalorder %s71, %s73
      %p80 = scmp.eq.s32.totalorder %s21, 1
      %p81 = por %p79, %p80
      %p82 = scmp.ne.s32.totalorder %s73, %s74
      %p83 = scmp.eq.s32.totalorder %s21, 0
      %p84 = por %p82, %p83
      %p85 = scmp.ne.s32.totalorder %s73, %s74
      %p86 = scmp.eq.s32.totalorder %s22, 1
      %p87 = por %p85, %p86
      %p89 = scmp.ne.s32.totalorder %s74, %s88
      %p90 = scmp.eq.s32.totalorder %s22, 0
      %p91 = por %p89, %p90
      %s93 = sadd.s32 %s92, 1
      %p96 = scmp.eq.s32.totalorder %s16, 1
      %p97 = scmp.ne.s32.totalorder %s92, %s94
      %p98 = scmp.eq.s32.totalorder %s16, 0
      %p99 = por %p97, %p98
      %p100 = scmp.ne.s32.totalorder %s92, %s94
      %p101 = scmp.eq.s32.totalorder %s21, 1
      %p102 = por %p100, %p101
      %p103 = scmp.ne.s32.totalorder %s94, %s95
      %p104 = scmp.eq.s32.totalorder %s21, 0
      %p105 = por %p103, %p104
      %p106 = scmp.ne.s32.totalorder %s94, %s95
      %p107 = scmp.eq.s32.totalorder %s22, 1
      %p108 = por %p106, %p107
      %p110 = scmp.ne.s32.totalorder %s95, %s109
      %p111 = scmp.eq.s32.totalorder %s22, 0
      %p112 = por %p110, %p111
      %s114 = sadd.s32 %s113, 1
      %p117 = scmp.eq.s32.totalorder %s16, 1
      %p118 = scmp.ne.s32.totalorder %s113, %s115
      %p119 = scmp.eq.s32.totalorder %s16, 0
      %p120 = por %p118, %p119
      %p121 = scmp.ne.s32.totalorder %s113, %s115
      %p122 = scmp.eq.s32.totalorder %s21, 1
      %p123 = por %p121, %p122
      %p124 = scmp.ne.s32.totalorder %s115, %s116
      %p125 = scmp.eq.s32.totalorder %s21, 0
      %p126 = por %p124, %p125
      %p127 = scmp.ne.s32.totalorder %s115, %s116
      %p128 = scmp.eq.s32.totalorder %s22, 1
      %p129 = por %p127, %p128
      %p131 = scmp.ne.s32.totalorder %s116, %s130
      %p132 = scmp.eq.s32.totalorder %s22, 0
      %p133 = por %p131, %p132
      %s134 = ssub.s32 %s16, %s23
      %p135 = scmp.eq.s32.totalorder %s134, 0
      %s137 = sadd.s32 %s136, 1
      %s138 = scalar_select %p135, %s136, %s137
      %p141 = pneg %p135
      %p142 = scmp.eq.s32.totalorder %s16, 1
      %p143 = por %p141, %p142
      %p144 = scmp.ne.s32.totalorder %s136, %s139
      %p145 = scmp.eq.s32.totalorder %s16, 0
      %p146 = por %p144, %p145
      %p147 = scmp.ne.s32.totalorder %s136, %s139
      %p148 = scmp.eq.s32.totalorder %s21, 1
      %p149 = por %p147, %p148
      %p150 = scmp.ne.s32.totalorder %s139, %s140
      %p151 = scmp.eq.s32.totalorder %s21, 0
      %p152 = por %p150, %p151
      %p153 = scmp.ne.s32.totalorder %s139, %s140
      %p154 = scmp.eq.s32.totalorder %s22, 1
      %p155 = por %p153, %p154
      %p157 = scmp.ne.s32.totalorder %s140, %s156
      %p158 = scmp.eq.s32.totalorder %s22, 0
      %p159 = por %p157, %p158
      %s160 = ssub.s32 %s16, %s23
      %p161 = scmp.eq.s32.totalorder %s160, 0
      %s163 = sadd.s32 %s162, 1
      %s164 = scalar_select %p161, %s162, %s163
      %p167 = pneg %p161
      %p168 = scmp.eq.s32.totalorder %s16, 1
      %p169 = por %p167, %p168
      %p170 = scmp.ne.s32.totalorder %s162, %s165
      %p171 = scmp.eq.s32.totalorder %s16, 0
      %p172 = por %p170, %p171
      %p173 = scmp.ne.s32.totalorder %s162, %s165
      %p174 = scmp.eq.s32.totalorder %s21, 1
      %p175 = por %p173, %p174
      %p176 = scmp.ne.s32.totalorder %s165, %s166
      %p177 = scmp.eq.s32.totalorder %s21, 0
      %p178 = por %p176, %p177
      %p179 = scmp.ne.s32.totalorder %s165, %s166
      %p180 = scmp.eq.s32.totalorder %s22, 1
      %p181 = por %p179, %p180
      %p183 = scmp.ne.s32.totalorder %s166, %s182
      %p184 = scmp.eq.s32.totalorder %s22, 0
      %p185 = por %p183, %p184
      %p186 = scmp.le.s32.totalorder 1, %s16
      %p187 = scmp.lt.s32.totalorder %s16, 3
      %p188 = pnand %p186, %p187
      %p189 = pneg %p188
      // Predicated region
      $region9: #{tpu_custom_call.1} parent=5 // pred_check
        _
      $region10: #{tpu_custom_call.1} parent=5 // pred_check_branch
        %191 = sbr.rel (%p188) target = $region12
      $region11: #{tpu_custom_call.1} parent=5 // pred_region
        %s192 = ssub.s32 %s16, 1
        // Predicated region
        $region13: #{tpu_custom_call.1} parent=11 // pred_check
          %p193 = pneg %p63
        $region14: #{tpu_custom_call.1} parent=11 // pred_check_branch
          %195 = sbr.rel (%p193) target = $region16
        $region15: #{tpu_custom_call.1} parent=11 // pred_region
          %s197 = ssub.s32 512, 512
          %198 = vsyncadd [#allocation3], %s197
          %s199 = sshll.u32 [#allocation2], 4
          %s200 = int_to_ptr.vmem [resolvable:$true] %s199
          %205 = dma.hbm_to_vmem [thread:$0]  %s1, 512, %s200, [#allocation3], 128, 128, 8
        $region16: #{tpu_custom_call.1} parent=11 // pred_fallthru
          _
        // Predicated region
        $region17: #{tpu_custom_call.1} parent=11 // pred_check
          %p206 = pneg %p84
        $region18: #{tpu_custom_call.1} parent=11 // pred_check_branch
          %208 = sbr.rel (%p206) target = $region20
        $region19: #{tpu_custom_call.1} parent=11 // pred_region
          _
        $region20: #{tpu_custom_call.1} parent=11 // pred_fallthru
          _
        // Predicated region
        $region21: #{tpu_custom_call.1} parent=11 // pred_check
          %p209 = pneg %p105
        $region22: #{tpu_custom_call.1} parent=11 // pred_check_branch
          %211 = sbr.rel (%p209) target = $region24
        $region23: #{tpu_custom_call.1} parent=11 // pred_region
          _
        $region24: #{tpu_custom_call.1} parent=11 // pred_fallthru
          _
        // Predicated region
        $region25: #{tpu_custom_call.1} parent=11 // pred_check
          %p212 = pneg %p126
        $region26: #{tpu_custom_call.1} parent=11 // pred_check_branch
          %214 = sbr.rel (%p212) target = $region28
        $region27: #{tpu_custom_call.1} parent=11 // pred_region
          _
        $region28: #{tpu_custom_call.1} parent=11 // pred_fallthru
          _
      $region12: #{tpu_custom_call.1} parent=5 // pred_fallthru
        _
      %p215 = scmp.lt.s32.totalorder %s16, 2
      // Predicated region
      $region29: #{tpu_custom_call.1} parent=5 // pred_check
        %p216 = pneg %p215
      $region30: #{tpu_custom_call.1} parent=5 // pred_check_branch
        %218 = sbr.rel (%p216) target = $region32
      $region31: #{tpu_custom_call.1} parent=5 // pred_region
        // Predicated region
        $region33: #{tpu_custom_call.1} parent=31 // pred_check
          %p219 = pneg %p36
        $region34: #{tpu_custom_call.1} parent=31 // pred_check_branch
          %221 = sbr.rel (%p219) target = $region36
        $region35: #{tpu_custom_call.1} parent=31 // pred_region
          %p222 = scmp.lt.s32.totalorder %s16, 1
          %s223 = scalar_select %p222, %s16, 1
          %s224 = smul.addr %s223, 8
          %s225 = scalar_lea.vmem %s0, %s224
        $region36: #{tpu_custom_call.1} parent=31 // pred_fallthru
          _
        // Predicated region
        $region37: #{tpu_custom_call.1} parent=31 // pred_check
          %p226 = pneg %p146
        $region38: #{tpu_custom_call.1} parent=31 // pred_check_branch
          %228 = sbr.rel (%p226) target = $region40
        $region39: #{tpu_custom_call.1} parent=31 // pred_region
          %p229 = scmp.lt.s32.totalorder %s16, 1
          %s230 = scalar_select %p229, %s16, 1
          %s231 = scalar_lea.vmem %s5, %s230
        $region40: #{tpu_custom_call.1} parent=31 // pred_fallthru
          _
      $region32: #{tpu_custom_call.1} parent=5 // pred_fallthru
        _
      %p232 = scmp.le.s32.totalorder 1, %s16
      %p233 = scmp.lt.s32.totalorder %s16, 3
      %p234 = pnand %p232, %p233
      %p235 = pneg %p234
      // Predicated region
      $region41: #{tpu_custom_call.1} parent=5 // pred_check
        _
      $region42: #{tpu_custom_call.1} parent=5 // pred_check_branch
        %237 = sbr.rel (%p234) target = $region44
      $region43: #{tpu_custom_call.1} parent=5 // pred_region
        %s238 = ssub.s32 %s16, 1
        // Predicated region
        $region45: #{tpu_custom_call.1} parent=43 // pred_check
          %p239 = pneg %p63
        $region46: #{tpu_custom_call.1} parent=43 // pred_check_branch
          %241 = sbr.rel (%p239) target = $region48
        $region47: #{tpu_custom_call.1} parent=43 // pred_region
          %242 = dma.done [#allocation3], 512
        $region48: #{tpu_custom_call.1} parent=43 // pred_fallthru
          _
        %p243 = scmp.lt.s32.totalorder %s21, 1
        %s244 = scalar_select %p243, %s21, 1
        %s245 = smul.addr %s244, 8
        %s246 = scalar_lea.vmem %s0, %s245
        %p247 = pneg %p42
        %p248 = pneg %p39
        %p249 = pneg %p63
        %p250 = pneg %p60
        %p251 = pneg %p84
        %p252 = pneg %p81
        %p253 = pneg %p105
        %p254 = pneg %p102
        %p255 = pneg %p126
        %p256 = pneg %p123
        %p257 = scmp.lt.s32.totalorder %s21, 1
        %s258 = scalar_select %p257, %s21, 1
        %s259 = scalar_lea.vmem %s5, %s258
        %p260 = pneg %p152
        %p261 = pneg %p149
        %p262 = pneg %p178
        %p263 = pneg %p175
        %s264 = sand.u32 %s165, 1
        %s265 = scalar_lea.sflag [#allocation4], %s264
        %s266 = sand.u32 %s165, 1
        %s267 = smul.addr %s266, 8
        %s268 = scalar_lea.vmem [#allocation5], %s267
        %p269 = scmp.lt.s32.totalorder %s21, 1
        %s270 = scalar_select %p269, %s21, 1
        %s271 = smul.addr %s270, 8
        %s272 = scalar_lea.vmem %s0, %s271
        %p273 = scmp.lt.s32.totalorder %s21, 1
        %s274 = scalar_select %p273, %s21, 1
        %s275 = scalar_lea.vmem %s5, %s274
        %v277 = vld [vmem:[%s272] sm:$0xff]
        %v278 = vpack.c.bf16 %v277, %v277
        %v279 = vld [vmem:[#allocation2] sm:$0xff]
        %v280 = vld [vmem:[#allocation2 + $0x8] sm:$0xff]
        %v281 = vld [vmem:[#allocation2 + $0x10] sm:$0xff]
        %v282 = vld [vmem:[#allocation2 + $0x18] sm:$0xff]
        %v283 = vpack.c.bf16 %v280, %v279
        %v284 = vpack.c.bf16 %v282, %v281
        %v285 = vld [vmem:[%s2] sm:$0xff]
        %v286 = vld [vmem:[%s2 + $0x8] sm:$0xff]
        %v287 = vpack.c.bf16 %v286, %v285
        %v288 = vld [vmem:[%s3] sm:$0xf]
        %v289 = vld [vmem:[%s4] sm:$0xf]
        %v290 = vld [vmem:[%s275] sm:$0x1]
        %vm291 = vcmp.eq.s32.totalorder %v290, 0
        %v292 = vsel %vm291, -1e+30, 0.0
        %vm293 = vcmask 261120
        %v295 = vsel %vm293, %v278, 0
        %297 = vmatprep.subr.bf16.mxu0 0
        %298 = vmatpush1.bf16.msra.mxu0 %v283
        %299 = vmatprep.subr.bf16.mxu0 0
        %300 = vmatpush1.bf16.msra.mxu0 %v284
        %301 = vmatprep.subr.bf16.mxu0 0
        %302 = vmatpush1.bf16.msra.mxu0 0
        %303 = vmatprep.subr.bf16.mxu0 0
        %304 = vmatpush1.bf16.msra.mxu0 0
        %305 = vmatprep.subr.bf16.mxu0 0
        %306 = vmatpush1.bf16.msra.mxu0 0
        %307 = vmatprep.subr.bf16.mxu0 0
        %308 = vmatpush1.bf16.msra.mxu0 0
        %309 = vmatprep.subr.bf16.mxu0 0
        %310 = vmatpush1.bf16.msra.mxu0 0
        %311 = vmatprep.subr.bf16.mxu0 0
        %312 = vmatpush1.bf16.msra.mxu0 0
        %313 = vmatprep.subr.bf16.mxu0 0
        %314 = vmatpush1.bf16.msra.mxu0 0
        %315 = vmatprep.subr.bf16.mxu0 0
        %316 = vmatpush1.bf16.msra.mxu0 0
        %317 = vmatprep.subr.bf16.mxu0 0
        %318 = vmatpush1.bf16.msra.mxu0 0
        %319 = vmatprep.subr.bf16.mxu0 0
        %320 = vmatpush1.bf16.msra.mxu0 0
        %321 = vmatprep.subr.bf16.mxu0 0
        %322 = vmatpush1.bf16.msra.mxu0 0
        %323 = vmatprep.subr.bf16.mxu0 0
        %324 = vmatpush1.bf16.msra.mxu0 0
        %325 = vmatprep.subr.bf16.mxu0 0
        %326 = vmatpush1.bf16.msra.mxu0 0
        %327 = vmatprep.subr.bf16.mxu0 0
        %328 = vmatpush1.bf16.msra.mxu0 0
        %329 = vmatprep.mubr.bf16.mxu0 0
        %330 = vmatmul.mubr.bf16.gmra.mrb[0].mxu0 %v295
        %v331 = vpop.f32.mrb[0].mxu0
        %v332 = vadd.f32 0.0, %v331
        %v333 = vpop.f32.mrb[0].mxu0
        %v334 = vpop.f32.mrb[0].mxu0
        %v335 = vpop.f32.mrb[0].mxu0
        %336 = vdwg.mxu0
        %v337 = vlaneseq
        %v338 = vshrl.u32 %v337, 7
        %v339 = vsub.s32 0, %v338
        %v340 = vrot.slane %v288, %v339
        %v341 = vadd.f32 %v332, %v340
        %v342 = vpack.c.bf16 %v341, %v341
        %v343 = vlaneseq
        %v344 = vshrl.u32 %v343, 7
        %v345 = vsub.s32 0, %v344
        %v346 = vrot.slane %v289, %v345
        %v347 = vadd.f32 %v332, %v346
        %v348 = vpack.c.bf16 %v347, %v347
        %vm349 = vcmask 64512
        %v351 = vsel %vm349, %v342, 0
        %v353 = vsel %vm349, %v278, 0
        %355 = vmatprep.subr.bf16.mxu0 0
        %356 = vmatpush1.bf16.xpose.msra.mxu0 %v353
        %357 = vmatprep.subr.bf16.mxu0 0
        %358 = vmatpush1.bf16.xpose.msra.mxu0 0
        %359 = vmatprep.subr.bf16.mxu0 0
        %360 = vmatpush1.bf16.xpose.msra.mxu0 0
        %361 = vmatprep.subr.bf16.mxu0 0
        %362 = vmatpush1.bf16.xpose.msra.mxu0 0
        %363 = vmatprep.subr.bf16.mxu0 0
        %364 = vmatpush1.bf16.xpose.msra.mxu0 0
        %365 = vmatprep.subr.bf16.mxu0 0
        %366 = vmatpush1.bf16.xpose.msra.mxu0 0
        %367 = vmatprep.subr.bf16.mxu0 0
        %368 = vmatpush1.bf16.xpose.msra.mxu0 0
        %369 = vmatprep.subr.bf16.mxu0 0
        %370 = vmatpush1.bf16.xpose.msra.mxu0 0
        %371 = vmatprep.subr.bf16.mxu0 0
        %372 = vmatpush1.bf16.xpose.msra.mxu0 0
        %373 = vmatprep.subr.bf16.mxu0 0
        %374 = vmatpush1.bf16.xpose.msra.mxu0 0
        %375 = vmatprep.subr.bf16.mxu0 0
        %376 = vmatpush1.bf16.xpose.msra.mxu0 0
        %377 = vmatprep.subr.bf16.mxu0 0
        %378 = vmatpush1.bf16.xpose.msra.mxu0 0
        %379 = vmatprep.subr.bf16.mxu0 0
        %380 = vmatpush1.bf16.xpose.msra.mxu0 0
        %381 = vmatprep.subr.bf16.mxu0 0
        %382 = vmatpush1.bf16.xpose.msra.mxu0 0
        %383 = vmatprep.subr.bf16.mxu0 0
        %384 = vmatpush1.bf16.xpose.msra.mxu0 0
        %385 = vmatprep.subr.bf16.mxu0 0
        %386 = vmatpush1.bf16.xpose.msra.mxu0 0
        %387 = vmatprep.mubr.bf16.mxu0 0
        %388 = vmatmul.mubr.bf16.gmra.mrb[0].mxu0 %v351
        %v389 = vpop.f32.mrb[0].mxu0
        %v390 = vadd.f32 0.0, %v389
        %v391 = vpop.f32.mrb[0].mxu0
        %v392 = vpop.f32.mrb[0].mxu0
        %v393 = vpop.f32.mrb[0].mxu0
        %394 = vdwg.mxu0
        %v396 = vsel %vm349, %v348, 0
        %v399 = vsel %vm349, %v287, 0
        %401 = vmatprep.subr.bf16.mxu0 0
        %402 = vmatpush1.bf16.xpose.msra.mxu0 %v399
        %403 = vmatprep.subr.bf16.mxu0 0
        %404 = vmatpush1.bf16.xpose.msra.mxu0 0
        %405 = vmatprep.subr.bf16.mxu0 0
        %406 = vmatpush1.bf16.xpose.msra.mxu0 0
        %407 = vmatprep.subr.bf16.mxu0 0
        %408 = vmatpush1.bf16.xpose.msra.mxu0 0
        %409 = vmatprep.subr.bf16.mxu0 0
        %410 = vmatpush1.bf16.xpose.msra.mxu0 0
        %411 = vmatprep.subr.bf16.mxu0 0
        %412 = vmatpush1.bf16.xpose.msra.mxu0 0
        %413 = vmatprep.subr.bf16.mxu0 0
        %414 = vmatpush1.bf16.xpose.msra.mxu0 0
        %415 = vmatprep.subr.bf16.mxu0 0
        %416 = vmatpush1.bf16.xpose.msra.mxu0 0
        %417 = vmatprep.subr.bf16.mxu0 0
        %418 = vmatpush1.bf16.xpose.msra.mxu0 0
        %419 = vmatprep.subr.bf16.mxu0 0
        %420 = vmatpush1.bf16.xpose.msra.mxu0 0
        %421 = vmatprep.subr.bf16.mxu0 0
        %422 = vmatpush1.bf16.xpose.msra.mxu0 0
        %423 = vmatprep.subr.bf16.mxu0 0
        %424 = vmatpush1.bf16.xpose.msra.mxu0 0
        %425 = vmatprep.subr.bf16.mxu0 0
        %426 = vmatpush1.bf16.xpose.msra.mxu0 0
        %427 = vmatprep.subr.bf16.mxu0 0
        %428 = vmatpush1.bf16.xpose.msra.mxu0 0
        %429 = vmatprep.subr.bf16.mxu0 0
        %430 = vmatpush1.bf16.xpose.msra.mxu0 0
        %431 = vmatprep.subr.bf16.mxu0 0
        %432 = vmatpush1.bf16.xpose.msra.mxu0 0
        %433 = vmatprep.mubr.bf16.mxu0 0
        %434 = vmatmul.mubr.bf16.gmra.mrb[0].mxu0 %v396
        %v435 = vpop.f32.mrb[0].mxu0
        %v436 = vadd.f32 0.0, %v435
        %v437 = vpop.f32.mrb[0].mxu0
        %v438 = vpop.f32.mrb[0].mxu0
        %v439 = vpop.f32.mrb[0].mxu0
        %440 = vdwg.mxu0
        %v441 = vlaneseq
        %v442 = vshrl.u32 %v441, 7
        %v443 = vsub.s32 1, %v442
        %v444 = vrot.slane %v288, %v443
        %446 = vrot.lane.b32.xlu0 %v444, 8
        %v447 = vpop.permute.xlu0 %446
        %v449 = vadd.f32 %v332, %v447
        %v450 = vpack.c.bf16 %v449, %v449
        %v451 = vlaneseq
        %v452 = vshrl.u32 %v451, 7
        %v453 = vsub.s32 1, %v452
        %v454 = vrot.slane %v289, %v453
        %456 = vrot.lane.b32.xlu0 %v454, 8
        %v457 = vpop.permute.xlu0 %456
        %v459 = vadd.f32 %v332, %v457
        %v460 = vpack.c.bf16 %v459, %v459
        %462 = vrot.lane.b32.xlu0 %v450, 120
        %v463 = vpop.permute.xlu0 %462
        %465 = vrot.lane.b32.xlu0 %v278, 120
        %v466 = vpop.permute.xlu0 %465
        %v468 = vsel %vm349, %v463, 0
        %v471 = vsel %vm349, %v466, 0
        %473 = vmatprep.subr.bf16.mxu0 0
        %474 = vmatpush1.bf16.xpose.msra.mxu0 %v471
        %475 = vmatprep.subr.bf16.mxu0 0
        %476 = vmatpush1.bf16.xpose.msra.mxu0 0
        %477 = vmatprep.subr.bf16.mxu0 0
        %478 = vmatpush1.bf16.xpose.msra.mxu0 0
        %479 = vmatprep.subr.bf16.mxu0 0
        %480 = vmatpush1.bf16.xpose.msra.mxu0 0
        %481 = vmatprep.subr.bf16.mxu0 0
        %482 = vmatpush1.bf16.xpose.msra.mxu0 0
        %483 = vmatprep.subr.bf16.mxu0 0
        %484 = vmatpush1.bf16.xpose.msra.mxu0 0
        %485 = vmatprep.subr.bf16.mxu0 0
        %486 = vmatpush1.bf16.xpose.msra.mxu0 0
        %487 = vmatprep.subr.bf16.mxu0 0
        %488 = vmatpush1.bf16.xpose.msra.mxu0 0
        %489 = vmatprep.subr.bf16.mxu0 0
        %490 = vmatpush1.bf16.xpose.msra.mxu0 0
        %491 = vmatprep.subr.bf16.mxu0 0
        %492 = vmatpush1.bf16.xpose.msra.mxu0 0
        %493 = vmatprep.subr.bf16.mxu0 0
        %494 = vmatpush1.bf16.xpose.msra.mxu0 0
        %495 = vmatprep.subr.bf16.mxu0 0
        %496 = vmatpush1.bf16.xpose.msra.mxu0 0
        %497 = vmatprep.subr.bf16.mxu0 0
        %498 = vmatpush1.bf16.xpose.msra.mxu0 0
        %499 = vmatprep.subr.bf16.mxu0 0
        %500 = vmatpush1.bf16.xpose.msra.mxu0 0
        %501 = vmatprep.subr.bf16.mxu0 0
        %502 = vmatpush1.bf16.xpose.msra.mxu0 0
        %503 = vmatprep.subr.bf16.mxu0 0
        %504 = vmatpush1.bf16.xpose.msra.mxu0 0
        %505 = vmatprep.mubr.bf16.mxu0 0
        %506 = vmatmul.mubr.bf16.gmra.mrb[0].mxu0 %v468
        %v507 = vpop.f32.mrb[0].mxu0
        %v508 = vadd.f32 0.0, %v507
        %v509 = vpop.f32.mrb[0].mxu0
        %v510 = vpop.f32.mrb[0].mxu0
        %v511 = vpop.f32.mrb[0].mxu0
        %512 = vdwg.mxu0
        %514 = vrot.lane.b32.xlu0 %v460, 120
        %v515 = vpop.permute.xlu0 %514
        %v517 = vsel %vm349, %v515, 0
        %519 = vmatprep.subr.bf16.mxu0 0
        %520 = vmatpush1.bf16.xpose.msra.mxu0 %v399
        %521 = vmatprep.subr.bf16.mxu0 0
        %522 = vmatpush1.bf16.xpose.msra.mxu0 0
        %523 = vmatprep.subr.bf16.mxu0 0
        %524 = vmatpush1.bf16.xpose.msra.mxu0 0
        %525 = vmatprep.subr.bf16.mxu0 0
        %526 = vmatpush1.bf16.xpose.msra.mxu0 0
        %527 = vmatprep.subr.bf16.mxu0 0
        %528 = vmatpush1.bf16.xpose.msra.mxu0 0
        %529 = vmatprep.subr.bf16.mxu0 0
        %530 = vmatpush1.bf16.xpose.msra.mxu0 0
        %531 = vmatprep.subr.bf16.mxu0 0
        %532 = vmatpush1.bf16.xpose.msra.mxu0 0
        %533 = vmatprep.subr.bf16.mxu0 0
        %534 = vmatpush1.bf16.xpose.msra.mxu0 0
        %535 = vmatprep.subr.bf16.mxu0 0
        %536 = vmatpush1.bf16.xpose.msra.mxu0 0
        %537 = vmatprep.subr.bf16.mxu0 0
        %538 = vmatpush1.bf16.xpose.msra.mxu0 0
        %539 = vmatprep.subr.bf16.mxu0 0
        %540 = vmatpush1.bf16.xpose.msra.mxu0 0
        %541 = vmatprep.subr.bf16.mxu0 0
        %542 = vmatpush1.bf16.xpose.msra.mxu0 0
        %543 = vmatprep.subr.bf16.mxu0 0
        %544 = vmatpush1.bf16.xpose.msra.mxu0 0
        %545 = vmatprep.subr.bf16.mxu0 0
        %546 = vmatpush1.bf16.xpose.msra.mxu0 0
        %547 = vmatprep.subr.bf16.mxu0 0
        %548 = vmatpush1.bf16.xpose.msra.mxu0 0
        %549 = vmatprep.subr.bf16.mxu0 0
        %550 = vmatpush1.bf16.xpose.msra.mxu0 0
        %551 = vmatprep.mubr.bf16.mxu0 0
        %552 = vmatmul.mubr.bf16.gmra.mrb[0].mxu0 %v517
        %v553 = vpop.f32.mrb[0].mxu0
        %v554 = vadd.f32 0.0, %v553
        %v555 = vpop.f32.mrb[0].mxu0
        %v556 = vpop.f32.mrb[0].mxu0
        %v557 = vpop.f32.mrb[0].mxu0
        %558 = vdwg.mxu0
        %v559 = vlaneseq
        %v560 = vshrl.u32 %v559, 7
        %v561 = vsub.s32 2, %v560
        %v562 = vrot.slane %v288, %v561
        %564 = vrot.lane.b32.xlu0 %v562, 16
        %v565 = vpop.permute.xlu0 %564
        %v567 = vadd.f32 %v332, %v565
        %v568 = vpack.c.bf16 %v567, %v567
        %v569 = vlaneseq
        %v570 = vshrl.u32 %v569, 7
        %v571 = vsub.s32 2, %v570
        %v572 = vrot.slane %v289, %v571
        %574 = vrot.lane.b32.xlu0 %v572, 16
        %v575 = vpop.permute.xlu0 %574
        %v577 = vadd.f32 %v332, %v575
        %v578 = vpack.c.bf16 %v577, %v577
        %580 = vrot.lane.b32.xlu0 %v568, 112
        %v581 = vpop.permute.xlu0 %580
        %582 = vrot.lane.b32.xlu0 %v278, 112
        %v583 = vpop.permute.xlu0 %582
        %v585 = vsel %vm349, %v581, 0
        %v588 = vsel %vm349, %v583, 0
        %590 = vmatprep.subr.bf16.mxu0 0
        %591 = vmatpush1.bf16.xpose.msra.mxu0 %v588
        %592 = vmatprep.subr.bf16.mxu0 0
        %593 = vmatpush1.bf16.xpose.msra.mxu0 0
        %594 = vmatprep.subr.bf16.mxu0 0
        %595 = vmatpush1.bf16.xpose.msra.mxu0 0
        %596 = vmatprep.subr.bf16.mxu0 0
        %597 = vmatpush1.bf16.xpose.msra.mxu0 0
        %598 = vmatprep.subr.bf16.mxu0 0
        %599 = vmatpush1.bf16.xpose.msra.mxu0 0
        %600 = vmatprep.subr.bf16.mxu0 0
        %601 = vmatpush1.bf16.xpose.msra.mxu0 0
        %602 = vmatprep.subr.bf16.mxu0 0
        %603 = vmatpush1.bf16.xpose.msra.mxu0 0
        %604 = vmatprep.subr.bf16.mxu0 0
        %605 = vmatpush1.bf16.xpose.msra.mxu0 0
        %606 = vmatprep.subr.bf16.mxu0 0
        %607 = vmatpush1.bf16.xpose.msra.mxu0 0
        %608 = vmatprep.subr.bf16.mxu0 0
        %609 = vmatpush1.bf16.xpose.msra.mxu0 0
        %610 = vmatprep.subr.bf16.mxu0 0
        %611 = vmatpush1.bf16.xpose.msra.mxu0 0
        %612 = vmatprep.subr.bf16.mxu0 0
        %613 = vmatpush1.bf16.xpose.msra.mxu0 0
        %614 = vmatprep.subr.bf16.mxu0 0
        %615 = vmatpush1.bf16.xpose.msra.mxu0 0
        %616 = vmatprep.subr.bf16.mxu0 0
        %617 = vmatpush1.bf16.xpose.msra.mxu0 0
        %618 = vmatprep.subr.bf16.mxu0 0
        %619 = vmatpush1.bf16.xpose.msra.mxu0 0
        %620 = vmatprep.subr.bf16.mxu0 0
        %621 = vmatpush1.bf16.xpose.msra.mxu0 0
        %622 = vmatprep.mubr.bf16.mxu0 0
        %623 = vmatmul.mubr.bf16.gmra.mrb[0].mxu0 %v585
        %v624 = vpop.f32.mrb[0].mxu0
        %v625 = vadd.f32 0.0, %v624
        %v626 = vpop.f32.mrb[0].mxu0
        %v627 = vpop.f32.mrb[0].mxu0
        %v628 = vpop.f32.mrb[0].mxu0
        %629 = vdwg.mxu0
        %631 = vrot.lane.b32.xlu0 %v578, 112
        %v632 = vpop.permute.xlu0 %631
        %v634 = vsel %vm349, %v632, 0
        %636 = vmatprep.subr.bf16.mxu0 0
        %637 = vmatpush1.bf16.xpose.msra.mxu0 %v399
        %638 = vmatprep.subr.bf16.mxu0 0
        %639 = vmatpush1.bf16.xpose.msra.mxu0 0
        %640 = vmatprep.subr.bf16.mxu0 0
        %641 = vmatpush1.bf16.xpose.msra.mxu0 0
        %642 = vmatprep.subr.bf16.mxu0 0
        %643 = vmatpush1.bf16.xpose.msra.mxu0 0
        %644 = vmatprep.subr.bf16.mxu0 0
        %645 = vmatpush1.bf16.xpose.msra.mxu0 0
        %646 = vmatprep.subr.bf16.mxu0 0
        %647 = vmatpush1.bf16.xpose.msra.mxu0 0
        %648 = vmatprep.subr.bf16.mxu0 0
        %649 = vmatpush1.bf16.xpose.msra.mxu0 0
        %650 = vmatprep.subr.bf16.mxu0 0
        %651 = vmatpush1.bf16.xpose.msra.mxu0 0
        %652 = vmatprep.subr.bf16.mxu0 0
        %653 = vmatpush1.bf16.xpose.msra.mxu0 0
        %654 = vmatprep.subr.bf16.mxu0 0
        %655 = vmatpush1.bf16.xpose.msra.mxu0 0
        %656 = vmatprep.subr.bf16.mxu0 0
        %657 = vmatpush1.bf16.xpose.msra.mxu0 0
        %658 = vmatprep.subr.bf16.mxu0 0
        %659 = vmatpush1.bf16.xpose.msra.mxu0 0
        %660 = vmatprep.subr.bf16.mxu0 0
        %661 = vmatpush1.bf16.xpose.msra.mxu0 0
        %662 = vmatprep.subr.bf16.mxu0 0
        %663 = vmatpush1.bf16.xpose.msra.mxu0 0
        %664 = vmatprep.subr.bf16.mxu0 0
        %665 = vmatpush1.bf16.xpose.msra.mxu0 0
        %666 = vmatprep.subr.bf16.mxu0 0
        %667 = vmatpush1.bf16.xpose.msra.mxu0 0
        %668 = vmatprep.mubr.bf16.mxu0 0
        %669 = vmatmul.mubr.bf16.gmra.mrb[0].mxu0 %v634
        %v670 = vpop.f32.mrb[0].mxu0
        %v671 = vadd.f32 0.0, %v670
        %v672 = vpop.f32.mrb[0].mxu0
        %v673 = vpop.f32.mrb[0].mxu0
        %v674 = vpop.f32.mrb[0].mxu0
        %675 = vdwg.mxu0
        %v676 = vlaneseq
        %v677 = vshrl.u32 %v676, 7
        %v678 = vsub.s32 3, %v677
        %v679 = vrot.slane %v288, %v678
        %681 = vrot.lane.b32.xlu0 %v679, 24
        %v682 = vpop.permute.xlu0 %681
        %v684 = vadd.f32 %v332, %v682
        %v685 = vpack.c.bf16 %v684, %v684
        %v686 = vlaneseq
        %v687 = vshrl.u32 %v686, 7
        %v688 = vsub.s32 3, %v687
        %v689 = vrot.slane %v289, %v688
        %691 = vrot.lane.b32.xlu0 %v689, 24
        %v692 = vpop.permute.xlu0 %691
        %v694 = vadd.f32 %v332, %v692
        %v695 = vpack.c.bf16 %v694, %v694
        %697 = vrot.lane.b32.xlu0 %v685, 104
        %v698 = vpop.permute.xlu0 %697
        %699 = vrot.lane.b32.xlu0 %v278, 104
        %v700 = vpop.permute.xlu0 %699
        %v702 = vsel %vm349, %v698, 0
        %v705 = vsel %vm349, %v700, 0
        %707 = vmatprep.subr.bf16.mxu0 0
        %708 = vmatpush1.bf16.xpose.msra.mxu0 %v705
        %709 = vmatprep.subr.bf16.mxu0 0
        %710 = vmatpush1.bf16.xpose.msra.mxu0 0
        %711 = vmatprep.subr.bf16.mxu0 0
        %712 = vmatpush1.bf16.xpose.msra.mxu0 0
        %713 = vmatprep.subr.bf16.mxu0 0
        %714 = vmatpush1.bf16.xpose.msra.mxu0 0
        %715 = vmatprep.subr.bf16.mxu0 0
        %716 = vmatpush1.bf16.xpose.msra.mxu0 0
        %717 = vmatprep.subr.bf16.mxu0 0
        %718 = vmatpush1.bf16.xpose.msra.mxu0 0
        %719 = vmatprep.subr.bf16.mxu0 0
        %720 = vmatpush1.bf16.xpose.msra.mxu0 0
        %721 = vmatprep.subr.bf16.mxu0 0
        %722 = vmatpush1.bf16.xpose.msra.mxu0 0
        %723 = vmatprep.subr.bf16.mxu0 0
        %724 = vmatpush1.bf16.xpose.msra.mxu0 0
        %725 = vmatprep.subr.bf16.mxu0 0
        %726 = vmatpush1.bf16.xpose.msra.mxu0 0
        %727 = vmatprep.subr.bf16.mxu0 0
        %728 = vmatpush1.bf16.xpose.msra.mxu0 0
        %729 = vmatprep.subr.bf16.mxu0 0
        %730 = vmatpush1.bf16.xpose.msra.mxu0 0
        %731 = vmatprep.subr.bf16.mxu0 0
        %732 = vmatpush1.bf16.xpose.msra.mxu0 0
        %733 = vmatprep.subr.bf16.mxu0 0
        %734 = vmatpush1.bf16.xpose.msra.mxu0 0
        %735 = vmatprep.subr.bf16.mxu0 0
        %736 = vmatpush1.bf16.xpose.msra.mxu0 0
        %737 = vmatprep.subr.bf16.mxu0 0
        %738 = vmatpush1.bf16.xpose.msra.mxu0 0
        %739 = vmatprep.mubr.bf16.mxu0 0
        %740 = vmatmul.mubr.bf16.gmra.mrb[0].mxu0 %v702
        %v741 = vpop.f32.mrb[0].mxu0
        %v742 = vadd.f32 0.0, %v741
        %v743 = vpop.f32.mrb[0].mxu0
        %v744 = vpop.f32.mrb[0].mxu0
        %v745 = vpop.f32.mrb[0].mxu0
        %746 = vdwg.mxu0
        %748 = vrot.lane.b32.xlu0 %v695, 104
        %v749 = vpop.permute.xlu0 %748
        %v751 = vsel %vm349, %v749, 0
        %753 = vmatprep.subr.bf16.mxu0 0
        %754 = vmatpush1.bf16.xpose.msra.mxu0 %v399
        %755 = vmatprep.subr.bf16.mxu0 0
        %756 = vmatpush1.bf16.xpose.msra.mxu0 0
        %757 = vmatprep.subr.bf16.mxu0 0
        %758 = vmatpush1.bf16.xpose.msra.mxu0 0
        %759 = vmatprep.subr.bf16.mxu0 0
        %760 = vmatpush1.bf16.xpose.msra.mxu0 0
        %761 = vmatprep.subr.bf16.mxu0 0
        %762 = vmatpush1.bf16.xpose.msra.mxu0 0
        %763 = vmatprep.subr.bf16.mxu0 0
        %764 = vmatpush1.bf16.xpose.msra.mxu0 0
        %765 = vmatprep.subr.bf16.mxu0 0
        %766 = vmatpush1.bf16.xpose.msra.mxu0 0
        %767 = vmatprep.subr.bf16.mxu0 0
        %768 = vmatpush1.bf16.xpose.msra.mxu0 0
        %769 = vmatprep.subr.bf16.mxu0 0
        %770 = vmatpush1.bf16.xpose.msra.mxu0 0
        %771 = vmatprep.subr.bf16.mxu0 0
        %772 = vmatpush1.bf16.xpose.msra.mxu0 0
        %773 = vmatprep.subr.bf16.mxu0 0
        %774 = vmatpush1.bf16.xpose.msra.mxu0 0
        %775 = vmatprep.subr.bf16.mxu0 0
        %776 = vmatpush1.bf16.xpose.msra.mxu0 0
        %777 = vmatprep.subr.bf16.mxu0 0
        %778 = vmatpush1.bf16.xpose.msra.mxu0 0
        %779 = vmatprep.subr.bf16.mxu0 0
        %780 = vmatpush1.bf16.xpose.msra.mxu0 0
        %781 = vmatprep.subr.bf16.mxu0 0
        %782 = vmatpush1.bf16.xpose.msra.mxu0 0
        %783 = vmatprep.subr.bf16.mxu0 0
        %784 = vmatpush1.bf16.xpose.msra.mxu0 0
        %785 = vmatprep.mubr.bf16.mxu0 0
        %786 = vmatmul.mubr.bf16.gmra.mrb[0].mxu0 %v751
        %v787 = vpop.f32.mrb[0].mxu0
        %v788 = vadd.f32 0.0, %v787
        %v789 = vpop.f32.mrb[0].mxu0
        %v790 = vpop.f32.mrb[0].mxu0
        %v791 = vpop.f32.mrb[0].mxu0
        %792 = vdwg.mxu0
        %797 = vrot.lane.b32.xlu0 %v436, 120
        %v798 = vpop.permute.xlu0 %797
        %799 = vrot.lane.b32.xlu0 %v554, 120
        %v800 = vpop.permute.xlu0 %799
        %801 = vrot.lane.b32.xlu0 %v671, 120
        %v802 = vpop.permute.xlu0 %801
        %803 = vrot.lane.b32.xlu0 %v788, 120
        %v804 = vpop.permute.xlu0 %803
        %809 = vrot.lane.b32.xlu0 %v436, 8
        %v810 = vpop.permute.xlu0 %809
        %811 = vrot.lane.b32.xlu0 %v554, 8
        %v812 = vpop.permute.xlu0 %811
        %813 = vrot.lane.b32.xlu0 %v671, 8
        %v814 = vpop.permute.xlu0 %813
        %815 = vrot.lane.b32.xlu0 %v788, 8
        %v816 = vpop.permute.xlu0 %815
        %v821 = vsel %vm349, %v798, %v810
        %v822 = vsel %vm349, %v800, %v812
        %v823 = vsel %vm349, %v802, %v814
        %v824 = vsel %vm349, %v804, %v816
        %v825 = vlaneseq
        %v826 = vshrl.u32 %v825, 7
        %831 = vrot.lane.b32.xlu0 %v821, 113
        %v832 = vpop.permute.xlu0 %831
        %833 = vrot.lane.b32.xlu0 %v822, 113
        %v834 = vpop.permute.xlu0 %833
        %835 = vrot.lane.b32.xlu0 %v823, 113
        %v836 = vpop.permute.xlu0 %835
        %837 = vrot.lane.b32.xlu0 %v824, 113
        %v838 = vpop.permute.xlu0 %837
        %843 = vrot.lane.b32.xlu0 %v821, 1
        %v844 = vpop.permute.xlu0 %843
        %845 = vrot.lane.b32.xlu0 %v822, 1
        %v846 = vpop.permute.xlu0 %845
        %847 = vrot.lane.b32.xlu0 %v823, 1
        %v848 = vpop.permute.xlu0 %847
        %849 = vrot.lane.b32.xlu0 %v824, 1
        %v850 = vpop.permute.xlu0 %849
        %vm855 = vcmask 7168
        %v856 = vsel %vm855, %v832, %v844
        %v857 = vsel %vm855, %v834, %v846
        %v858 = vsel %vm855, %v836, %v848
        %v859 = vsel %vm855, %v838, %v850
        %v860 = vand.u32 %v826, 1
        %vm861 = vcmp.ne.s32.totalorder %v860, 0
        %v862 = vsel %vm861, %v856, %v821
        %v863 = vsel %vm861, %v857, %v822
        %v864 = vsel %vm861, %v858, %v823
        %v865 = vsel %vm861, %v859, %v824
        %870 = vrot.lane.b32.xlu0 %v862, 114
        %v871 = vpop.permute.xlu0 %870
        %872 = vrot.lane.b32.xlu0 %v863, 114
        %v873 = vpop.permute.xlu0 %872
        %874 = vrot.lane.b32.xlu0 %v864, 114
        %v875 = vpop.permute.xlu0 %874
        %876 = vrot.lane.b32.xlu0 %v865, 114
        %v877 = vpop.permute.xlu0 %876
        %882 = vrot.lane.b32.xlu0 %v862, 2
        %v883 = vpop.permute.xlu0 %882
        %884 = vrot.lane.b32.xlu0 %v863, 2
        %v885 = vpop.permute.xlu0 %884
        %886 = vrot.lane.b32.xlu0 %v864, 2
        %v887 = vpop.permute.xlu0 %886
        %888 = vrot.lane.b32.xlu0 %v865, 2
        %v889 = vpop.permute.xlu0 %888
        %vm894 = vcmask 15360
        %v895 = vsel %vm894, %v871, %v883
        %v896 = vsel %vm894, %v873, %v885
        %v897 = vsel %vm894, %v875, %v887
        %v898 = vsel %vm894, %v877, %v889
        %v899 = vand.u32 %v826, 2
        %vm900 = vcmp.ne.s32.totalorder %v899, 0
        %v901 = vsel %vm900, %v895, %v862
        %v902 = vsel %vm900, %v896, %v863
        %v903 = vsel %vm900, %v897, %v864
        %v904 = vsel %vm900, %v898, %v865
        %909 = vrot.lane.b32.xlu0 %v901, 116
        %v910 = vpop.permute.xlu0 %909
        %911 = vrot.lane.b32.xlu0 %v902, 116
        %v912 = vpop.permute.xlu0 %911
        %913 = vrot.lane.b32.xlu0 %v903, 116
        %v914 = vpop.permute.xlu0 %913
        %915 = vrot.lane.b32.xlu0 %v904, 116
        %v916 = vpop.permute.xlu0 %915
        %921 = vrot.lane.b32.xlu0 %v901, 4
        %v922 = vpop.permute.xlu0 %921
        %923 = vrot.lane.b32.xlu0 %v902, 4
        %v924 = vpop.permute.xlu0 %923
        %925 = vrot.lane.b32.xlu0 %v903, 4
        %v926 = vpop.permute.xlu0 %925
        %927 = vrot.lane.b32.xlu0 %v904, 4
        %v928 = vpop.permute.xlu0 %927
        %vm933 = vcmask 31744
        %v934 = vsel %vm933, %v910, %v922
        %v935 = vsel %vm933, %v912, %v924
        %v936 = vsel %vm933, %v914, %v926
        %v937 = vsel %vm933, %v916, %v928
        %v938 = vand.u32 %v826, 4
        %vm939 = vcmp.ne.s32.totalorder %v938, 0
        %v940 = vsel %vm939, %v934, %v901
        %v941 = vsel %vm939, %v935, %v902
        %v942 = vsel %vm939, %v936, %v903
        %v943 = vsel %vm939, %v937, %v904
        %v944 = vadd.f32 %v390, %v940
        %v945 = vadd.f32 %v508, %v941
        %v946 = vadd.f32 %v625, %v942
        %v947 = vadd.f32 %v742, %v943
        %v949 = vlaneseq
        %v950 = vshrl.u32 %v949, 7
        %v951 = vsub.s32 0, %v950
        %v952 = vrot.slane %v292, %v951
        %v954 = vadd.f32 %v944, %v952
        %v955 = vadd.f32 %v945, %v952
        %v956 = vadd.f32 %v946, %v952
        %v957 = vadd.f32 %v947, %v952
        %v958 = vsel %vm349, %v954, -inf
        %959 = vmax.xlane.f32.xlu0 %v958
        %v960 = vpop.xlane.xlu0 %959
        %v961 = vsel %vm349, %v955, -inf
        %962 = vmax.xlane.f32.xlu0 %v961
        %v963 = vpop.xlane.xlu0 %962
        %v964 = vsel %vm349, %v956, -inf
        %965 = vmax.xlane.f32.xlu0 %v964
        %v966 = vpop.xlane.xlu0 %965
        %v967 = vsel %vm349, %v957, -inf
        %968 = vmax.xlane.f32.xlu0 %v967
        %v969 = vpop.xlane.xlu0 %968
        %v970 = vsub.f32 %v954, %v960
        %v971 = vsub.f32 %v955, %v963
        %v972 = vsub.f32 %v956, %v966
        %v973 = vsub.f32 %v957, %v969
        %v974 = vmul.f32 %v970, 1.442695
        %v975 = vpow.pop %v974
        %v976 = vmul.f32 %v971, 1.442695
        %v977 = vpow.pop %v976
        %v978 = vmul.f32 %v972, 1.442695
        %v979 = vpow.pop %v978
        %v980 = vmul.f32 %v973, 1.442695
        %v981 = vpow.pop %v980
        %v982 = vsel %vm349, %v975, 0.0
        %983 = vadd.xlane.f32.xlu0 %v982
        %v984 = vpop.xlane.xlu0 %983
        %v985 = vsel %vm349, %v977, 0.0
        %986 = vadd.xlane.f32.xlu0 %v985
        %v987 = vpop.xlane.xlu0 %986
        %v988 = vsel %vm349, %v979, 0.0
        %989 = vadd.xlane.f32.xlu0 %v988
        %v990 = vpop.xlane.xlu0 %989
        %v991 = vsel %vm349, %v981, 0.0
        %992 = vadd.xlane.f32.xlu0 %v991
        %v993 = vpop.xlane.xlu0 %992
        %v994 = vrcp.pop %v984
        %v995 = vrcp.pop %v987
        %v996 = vrcp.pop %v990
        %v997 = vrcp.pop %v993
        %v998 = vmul.f32 %v975, %v994
        %v999 = vmul.f32 %v977, %v995
        %v1000 = vmul.f32 %v979, %v996
        %v1001 = vmul.f32 %v981, %v997
        %v1002 = vpack.c.bf16 %v332, %v332
        %v1003 = vpack.c.bf16 %v998, %v998
        %1005 = vrot.lane.b32.xlu0 %v1002, 96
        %v1006 = vpop.permute.xlu0 %1005
        %v1008 = vsel %vm349, %v1003, 0
        %vm1010 = vcmask 1043456
        %v1012 = vsel %vm1010, %v1006, 0
        %1014 = vmatprep.subr.bf16.mxu0 0
        %1015 = vmatpush1.bf16.msra.mxu0 %v1012
        %1016 = vmatprep.subr.bf16.mxu0 0
        %1017 = vmatpush1.bf16.msra.mxu0 0
        %1018 = vmatprep.subr.bf16.mxu0 0
        %1019 = vmatpush1.bf16.msra.mxu0 0
        %1020 = vmatprep.subr.bf16.mxu0 0
        %1021 = vmatpush1.bf16.msra.mxu0 0
        %1022 = vmatprep.subr.bf16.mxu0 0
        %1023 = vmatpush1.bf16.msra.mxu0 0
        %1024 = vmatprep.subr.bf16.mxu0 0
        %1025 = vmatpush1.bf16.msra.mxu0 0
        %1026 = vmatprep.subr.bf16.mxu0 0
        %1027 = vmatpush1.bf16.msra.mxu0 0
        %1028 = vmatprep.subr.bf16.mxu0 0
        %1029 = vmatpush1.bf16.msra.mxu0 0
        %1030 = vmatprep.subr.bf16.mxu0 0
        %1031 = vmatpush1.bf16.msra.mxu0 0
        %1032 = vmatprep.subr.bf16.mxu0 0
        %1033 = vmatpush1.bf16.msra.mxu0 0
        %1034 = vmatprep.subr.bf16.mxu0 0
        %1035 = vmatpush1.bf16.msra.mxu0 0
        %1036 = vmatprep.subr.bf16.mxu0 0
        %1037 = vmatpush1.bf16.msra.mxu0 0
        %1038 = vmatprep.subr.bf16.mxu0 0
        %1039 = vmatpush1.bf16.msra.mxu0 0
        %1040 = vmatprep.subr.bf16.mxu0 0
        %1041 = vmatpush1.bf16.msra.mxu0 0
        %1042 = vmatprep.subr.bf16.mxu0 0
        %1043 = vmatpush1.bf16.msra.mxu0 0
        %1044 = vmatprep.subr.bf16.mxu0 0
        %1045 = vmatpush1.bf16.msra.mxu0 0
        %1046 = vmatprep.mubr.bf16.mxu0 0
        %1047 = vmatmul.mubr.bf16.gmra.mrb[0].mxu0 %v1008
        %v1048 = vpop.f32.mrb[0].mxu0
        %v1049 = vadd.f32 0.0, %v1048
        %v1050 = vpop.f32.mrb[0].mxu0
        %v1051 = vpop.f32.mrb[0].mxu0
        %v1052 = vpop.f32.mrb[0].mxu0
        %1053 = vdwg.mxu0
        %v1054 = vpack.c.bf16 %v999, %v999
        %1055 = vrot.lane.b32.xlu0 %v1002, 88
        %v1056 = vpop.permute.xlu0 %1055
        %v1058 = vsel %vm349, %v1054, 0
        %v1061 = vsel %vm1010, %v1056, 0
        %1063 = vmatprep.subr.bf16.mxu0 0
        %1064 = vmatpush1.bf16.msra.mxu0 %v1061
        %1065 = vmatprep.subr.bf16.mxu0 0
        %1066 = vmatpush1.bf16.msra.mxu0 0
        %1067 = vmatprep.subr.bf16.mxu0 0
        %1068 = vmatpush1.bf16.msra.mxu0 0
        %1069 = vmatprep.subr.bf16.mxu0 0
        %1070 = vmatpush1.bf16.msra.mxu0 0
        %1071 = vmatprep.subr.bf16.mxu0 0
        %1072 = vmatpush1.bf16.msra.mxu0 0
        %1073 = vmatprep.subr.bf16.mxu0 0
        %1074 = vmatpush1.bf16.msra.mxu0 0
        %1075 = vmatprep.subr.bf16.mxu0 0
        %1076 = vmatpush1.bf16.msra.mxu0 0
        %1077 = vmatprep.subr.bf16.mxu0 0
        %1078 = vmatpush1.bf16.msra.mxu0 0
        %1079 = vmatprep.subr.bf16.mxu0 0
        %1080 = vmatpush1.bf16.msra.mxu0 0
        %1081 = vmatprep.subr.bf16.mxu0 0
        %1082 = vmatpush1.bf16.msra.mxu0 0
        %1083 = vmatprep.subr.bf16.mxu0 0
        %1084 = vmatpush1.bf16.msra.mxu0 0
        %1085 = vmatprep.subr.bf16.mxu0 0
        %1086 = vmatpush1.bf16.msra.mxu0 0
        %1087 = vmatprep.subr.bf16.mxu0 0
        %1088 = vmatpush1.bf16.msra.mxu0 0
        %1089 = vmatprep.subr.bf16.mxu0 0
        %1090 = vmatpush1.bf16.msra.mxu0 0
        %1091 = vmatprep.subr.bf16.mxu0 0
        %1092 = vmatpush1.bf16.msra.mxu0 0
        %1093 = vmatprep.subr.bf16.mxu0 0
        %1094 = vmatpush1.bf16.msra.mxu0 0
        %1095 = vmatprep.mubr.bf16.mxu0 0
        %1096 = vmatmul.mubr.bf16.gmra.mrb[0].mxu0 %v1058
        %v1097 = vpop.f32.mrb[0].mxu0
        %v1098 = vadd.f32 0.0, %v1097
        %v1099 = vpop.f32.mrb[0].mxu0
        %v1100 = vpop.f32.mrb[0].mxu0
        %v1101 = vpop.f32.mrb[0].mxu0
        %1102 = vdwg.mxu0
        %v1103 = vpack.c.bf16 %v1000, %v1000
        %1104 = vrot.lane.b32.xlu0 %v1002, 80
        %v1105 = vpop.permute.xlu0 %1104
        %v1107 = vsel %vm349, %v1103, 0
        %v1110 = vsel %vm1010, %v1105, 0
        %1112 = vmatprep.subr.bf16.mxu0 0
        %1113 = vmatpush1.bf16.msra.mxu0 %v1110
        %1114 = vmatprep.subr.bf16.mxu0 0
        %1115 = vmatpush1.bf16.msra.mxu0 0
        %1116 = vmatprep.subr.bf16.mxu0 0
        %1117 = vmatpush1.bf16.msra.mxu0 0
        %1118 = vmatprep.subr.bf16.mxu0 0
        %1119 = vmatpush1.bf16.msra.mxu0 0
        %1120 = vmatprep.subr.bf16.mxu0 0
        %1121 = vmatpush1.bf16.msra.mxu0 0
        %1122 = vmatprep.subr.bf16.mxu0 0
        %1123 = vmatpush1.bf16.msra.mxu0 0
        %1124 = vmatprep.subr.bf16.mxu0 0
        %1125 = vmatpush1.bf16.msra.mxu0 0
        %1126 = vmatprep.subr.bf16.mxu0 0
        %1127 = vmatpush1.bf16.msra.mxu0 0
        %1128 = vmatprep.subr.bf16.mxu0 0
        %1129 = vmatpush1.bf16.msra.mxu0 0
        %1130 = vmatprep.subr.bf16.mxu0 0
        %1131 = vmatpush1.bf16.msra.mxu0 0
        %1132 = vmatprep.subr.bf16.mxu0 0
        %1133 = vmatpush1.bf16.msra.mxu0 0
        %1134 = vmatprep.subr.bf16.mxu0 0
        %1135 = vmatpush1.bf16.msra.mxu0 0
        %1136 = vmatprep.subr.bf16.mxu0 0
        %1137 = vmatpush1.bf16.msra.mxu0 0
        %1138 = vmatprep.subr.bf16.mxu0 0
        %1139 = vmatpush1.bf16.msra.mxu0 0
        %1140 = vmatprep.subr.bf16.mxu0 0
        %1141 = vmatpush1.bf16.msra.mxu0 0
        %1142 = vmatprep.subr.bf16.mxu0 0
        %1143 = vmatpush1.bf16.msra.mxu0 0
        %1144 = vmatprep.mubr.bf16.mxu0 0
        %1145 = vmatmul.mubr.bf16.gmra.mrb[0].mxu0 %v1107
        %v1146 = vpop.f32.mrb[0].mxu0
        %v1147 = vadd.f32 0.0, %v1146
        %v1148 = vpop.f32.mrb[0].mxu0
        %v1149 = vpop.f32.mrb[0].mxu0
        %v1150 = vpop.f32.mrb[0].mxu0
        %1151 = vdwg.mxu0
        %v1152 = vpack.c.bf16 %v1001, %v1001
        %1153 = vrot.lane.b32.xlu0 %v1002, 72
        %v1154 = vpop.permute.xlu0 %1153
        %v1156 = vsel %vm349, %v1152, 0
        %v1159 = vsel %vm1010, %v1154, 0
        %1161 = vmatprep.subr.bf16.mxu0 0
        %1162 = vmatpush1.bf16.msra.mxu0 %v1159
        %1163 = vmatprep.subr.bf16.mxu0 0
        %1164 = vmatpush1.bf16.msra.mxu0 0
        %1165 = vmatprep.subr.bf16.mxu0 0
        %1166 = vmatpush1.bf16.msra.mxu0 0
        %1167 = vmatprep.subr.bf16.mxu0 0
        %1168 = vmatpush1.bf16.msra.mxu0 0
        %1169 = vmatprep.subr.bf16.mxu0 0
        %1170 = vmatpush1.bf16.msra.mxu0 0
        %1171 = vmatprep.subr.bf16.mxu0 0
        %1172 = vmatpush1.bf16.msra.mxu0 0
        %1173 = vmatprep.subr.bf16.mxu0 0
        %1174 = vmatpush1.bf16.msra.mxu0 0
        %1175 = vmatprep.subr.bf16.mxu0 0
        %1176 = vmatpush1.bf16.msra.mxu0 0
        %1177 = vmatprep.subr.bf16.mxu0 0
        %1178 = vmatpush1.bf16.msra.mxu0 0
        %1179 = vmatprep.subr.bf16.mxu0 0
        %1180 = vmatpush1.bf16.msra.mxu0 0
        %1181 = vmatprep.subr.bf16.mxu0 0
        %1182 = vmatpush1.bf16.msra.mxu0 0
        %1183 = vmatprep.subr.bf16.mxu0 0
        %1184 = vmatpush1.bf16.msra.mxu0 0
        %1185 = vmatprep.subr.bf16.mxu0 0
        %1186 = vmatpush1.bf16.msra.mxu0 0
        %1187 = vmatprep.subr.bf16.mxu0 0
        %1188 = vmatpush1.bf16.msra.mxu0 0
        %1189 = vmatprep.subr.bf16.mxu0 0
        %1190 = vmatpush1.bf16.msra.mxu0 0
        %1191 = vmatprep.subr.bf16.mxu0 0
        %1192 = vmatpush1.bf16.msra.mxu0 0
        %1193 = vmatprep.mubr.bf16.mxu0 0
        %1194 = vmatmul.mubr.bf16.gmra.mrb[0].mxu0 %v1156
        %v1195 = vpop.f32.mrb[0].mxu0
        %v1196 = vadd.f32 0.0, %v1195
        %v1197 = vpop.f32.mrb[0].mxu0
        %v1198 = vpop.f32.mrb[0].mxu0
        %v1199 = vpop.f32.mrb[0].mxu0
        %1200 = vdwg.mxu0
        %1202 = vrot.lane.b32.xlu0 %v1098, 8
        %v1203 = vpop.permute.xlu0 %1202
        %1206 = vrot.lane.b32.xlu0 %v1147, 16
        %v1207 = vpop.permute.xlu0 %1206
        %1210 = vrot.lane.b32.xlu0 %v1196, 24
        %v1211 = vpop.permute.xlu0 %1210
        %v1213 = vsel %vm349, %v1049, %v1203
        %vm1214 = vcmask 130048
        %v1215 = vsel %vm1214, %v1213, %v1207
        %vm1216 = vcmask 195584
        %v1217 = vsel %vm1216, %v1215, %v1211
        %1218 = vst.msk [vmem:[%s268] sm:$0xff] %vm293, %v1217
        %s1219 = sand.u32 %s165, 1
        %s1220 = scalar_lea.sflag [#allocation4], %s1219
        %s1221 = sand.u32 %s165, 1
        %s1222 = smul.addr %s1221, 8
        %s1223 = scalar_lea.vmem [#allocation5], %s1222
        // Predicated region
        $region49: #{tpu_custom_call.1} parent=43 // pred_check
          %p1224 = pneg %p175
        $region50: #{tpu_custom_call.1} parent=43 // pred_check_branch
          %1226 = sbr.rel (%p1224) target = $region52
        $region51: #{tpu_custom_call.1} parent=43 // pred_region
          %s1228 = ssub.s32 128, 128
          %1229 = vsyncadd %s1220, %s1228
          %s1230 = smul.addr %s21, 128
          %s1231 = scalar_lea.hbm %s6, %s1230
          %s1233 = sshll.u32 %s1223, 4
          %s1234 = int_to_ptr.vmem [resolvable:$true] %s1233
          %1236 = dma.vmem_to_hbm [thread:$0]  %s1234, 128, %s1231, %s1220
        $region52: #{tpu_custom_call.1} parent=43 // pred_fallthru
          _
      $region44: #{tpu_custom_call.1} parent=5 // pred_fallthru
        _
      %p1237 = scmp.le.s32.totalorder 2, %s16
      // Predicated region
      $region53: #{tpu_custom_call.1} parent=5 // pred_check
        %p1238 = pneg %p1237
      $region54: #{tpu_custom_call.1} parent=5 // pred_check_branch
        %1240 = sbr.rel (%p1238) target = $region56
      $region55: #{tpu_custom_call.1} parent=5 // pred_region
        %s1241 = ssub.s32 %s16, 2
        // Predicated region
        $region57: #{tpu_custom_call.1} parent=55 // pred_check
          %p1242 = pneg %p181
        $region58: #{tpu_custom_call.1} parent=55 // pred_check_branch
          %1244 = sbr.rel (%p1242) target = $region60
        $region59: #{tpu_custom_call.1} parent=55 // pred_region
          %s1245 = sand.u32 %s166, 1
          %s1246 = scalar_lea.sflag [#allocation4], %s1245
          %s1247 = sand.u32 %s166, 1
          %s1248 = smul.addr %s1247, 8
          %s1249 = scalar_lea.vmem [#allocation5], %s1248
          %1250 = dma.done %s1246, 128
        $region60: #{tpu_custom_call.1} parent=55 // pred_fallthru
          _
      $region56: #{tpu_custom_call.1} parent=5 // pred_fallthru
        _
    $region6: #{tpu_custom_call.1} parent=1 // loop_footer
      %s20 = sadd.s32 1, %s16
    $region7: #{tpu_custom_call.1} parent=1 // loop_footer_branch
      %15 = sbr.rel target = $region3
    $region8: #{tpu_custom_call.1} parent=1 // loop_exit
      _
    %1251 = vsyncpa [#allocation3], 1
    %s1252 = scalar_lea.sflag [#allocation3], 1
    %1253 = vsyncpa %s1252, 1
    %1254 = vsyncpa [#allocation4], 1
    %s1255 = scalar_lea.sflag [#allocation4], 1
    %1256 = vsyncpa %s1255, 1

</llo_original>
